<compile_context>
chip_gen: v7x
topology: tpu7x:2x2x1
jax: 0.10.0
libtpu: 0.0.40
codegen_flags: <defaults>
</compile_context>

<pallas_src>
import jax
import jax.numpy as jnp
from jax.experimental import pallas as pl
from jax.experimental.pallas import tpu as pltpu


def _round_up(x, m):
    return (x + m - 1) // m * m


# ---------------------------------------------------------------------------
# Pass 1: tiled conv matmul + per-(M tile) partial BN statistics.
# ---------------------------------------------------------------------------
def _conv_stats_kernel(p_ref, w_ref, conv_ref, stats_ref, acc_ref):
    """One (m_tile, tn) output tile, accumulated over the K grid axis.

    p_ref:     (m_tile, k_tile)  bf16  im2col patches block
    w_ref:     (k_tile, tn)      bf16  weight block
    conv_ref:  (m_tile, tn)      bf16  un-normalised conv output block
    stats_ref: (1, 2, tn)        f32   [sum, sum_sq] over this M tile
    acc_ref:   (m_tile, tn)      f32   VMEM accumulator scratch
    """
    ki = pl.program_id(2)

    @pl.when(ki == 0)
    def _():
        acc_ref[...] = jnp.zeros_like(acc_ref)

    acc_ref[...] += jnp.dot(p_ref[...], w_ref[...],
                            preferred_element_type=jnp.float32)

    @pl.when(ki == pl.num_programs(2) - 1)
    def _():
        acc = acc_ref[...]
        conv_ref[...] = acc.astype(conv_ref.dtype)
        s = jnp.sum(acc, axis=0, keepdims=True)           # (1, tn)
        ss = jnp.sum(acc * acc, axis=0, keepdims=True)    # (1, tn)
        stats_ref[...] = jnp.concatenate([s, ss], axis=0)[None]


# ---------------------------------------------------------------------------
# Pass 2: scale * x + bias, ReLU (lane-dense elementwise).
# ---------------------------------------------------------------------------
def _bn_relu_kernel(conv_ref, scale_ref, bias_ref, o_ref):
    y = conv_ref[...].astype(jnp.float32) * scale_ref[...] + bias_ref[...]
    o_ref[...] = jnp.maximum(y, 0.0).astype(o_ref.dtype)


# ---------------------------------------------------------------------------
# Wrapper helpers.
# ---------------------------------------------------------------------------
def _im2col_nhwc(x_nhwc, kh, kw, stride, padding, dilation):
    """Build the (M, K) = (N*OH*OW, KH*KW*Cin) patches matrix in the wrapper.

    All strided / dilated slicing happens here as XLA ops, so the kernel only
    ever reads contiguous 2-D slabs.
    """
    n, h, w, cin = x_nhwc.shape
    oh = (h + 2 * padding - dilation * (kh - 1) - 1) // stride + 1
    ow = (w + 2 * padding - dilation * (kw - 1) - 1) // stride + 1
    assert oh > 0 and ow > 0, (oh, ow)
    x_pad = jnp.pad(x_nhwc,
                    ((0, 0), (padding, padding), (padding, padding), (0, 0)))
    taps = []
    for i in range(kh):
        for j in range(kw):
            h0, w0 = i * dilation, j * dilation
            taps.append(jax.lax.slice(
                x_pad, (0, h0, w0, 0),
                (n, h0 + (oh - 1) * stride + 1, w0 + (ow - 1) * stride + 1,
                 cin),
                (1, stride, stride, 1)))                  # (N, OH, OW, Cin)
    pat = jnp.stack(taps, axis=3)                         # (N, OH, OW, KHKW, Cin)
    return pat.reshape(n * oh * ow, kh * kw * cin), oh, ow


def cbr_forward_nhwc(x_nhwc, w_oihw, gamma, beta, *, stride, padding,
                     dilation=1, eps=1e-5, m_tile=1024,
                     out_dtype=jnp.float32, conv_dtype=jnp.bfloat16,
                     mxu_dtype=jnp.bfloat16):
    """NHWC in, NHWC out (fast path, no layout transposes)."""
    n, h, w_in, cin = x_nhwc.shape
    cout, cin_w, kh, kw = w_oihw.shape
    assert cin == cin_w, (cin, cin_w)

    patches, oh, ow = _im2col_nhwc(x_nhwc, kh, kw, stride, padding, dilation)
    m, k = patches.shape

    lane = 128
    # --- Tile sizes --------------------------------------------------------
    # Contraction: all kh*kw taps folded into K (best MXU fill for small Cin).
    k_tile = min(_round_up(k, lane), 512)
    k_pad = _round_up(k, k_tile)
    # Cout tile: 256 fills the 256-wide v6e/v7x MXU; 128 for small Cout / v5e.
    tn = 256 if cout > 128 else 128
    cout_p = _round_up(cout, tn)
    # M tile: multiple of 16 (bf16 sublane packing of the conv intermediate).
    m_tile = max(16, _round_up(min(m_tile, _round_up(m, 16)), 16))
    m_pad = _round_up(m, m_tile)

    num_m, num_n, num_k = m_pad // m_tile, cout_p // tn, k_pad // k_tile

    # --- Operand prep (zero padding is exact: padded rows/cols contribute 0).
    patches = jnp.pad(patches,
                      ((0, m_pad - m), (0, k_pad - k))).astype(mxu_dtype)
    w2d = jnp.transpose(w_oihw, (2, 3, 1, 0)).reshape(kh * kw * cin, cout)
    w2d = jnp.pad(w2d, ((0, k_pad - k), (0, cout_p - cout))).astype(mxu_dtype)
    gamma_p = jnp.pad(gamma.astype(jnp.float32), (0, cout_p - cout))
    beta_p = jnp.pad(beta.astype(jnp.float32), (0, cout_p - cout))

    # --- VMEM budget from the actual block sizes (cap safe for v7x 64 MiB). -
    conv_bytes = jnp.dtype(conv_dtype).itemsize
    vmem_need = (2 * m_tile * k_tile * 2        # patches blocks (double-buf)
                 + 2 * k_tile * tn * 2          # weight blocks
                 + 2 * m_tile * tn * conv_bytes  # conv output blocks
                 + 2 * 8 * tn * 4               # stats blocks (sublane-padded)
                 + m_tile * tn * 4)             # f32 accumulator scratch
    vmem_limit = int(min(max(2 * vmem_need, 16 * 2**20), 48 * 2**20))

    # --- Pass 1: conv + partial statistics. ---------------------------------
    conv_out, stats = pl.pallas_call(
        _conv_stats_kernel,
        out_shape=(jax.ShapeDtypeStruct((m_pad, cout_p), conv_dtype),
                   jax.ShapeDtypeStruct((num_m, 2, cout_p), jnp.float32)),
        grid=(num_m, num_n, num_k),
        in_specs=[
            pl.BlockSpec((m_tile, k_tile), lambda mi, j, ki: (mi, ki)),
            pl.BlockSpec((k_tile, tn), lambda mi, j, ki: (ki, j)),
        ],
        out_specs=(
            pl.BlockSpec((m_tile, tn), lambda mi, j, ki: (mi, j)),
            pl.BlockSpec((1, 2, tn), lambda mi, j, ki: (mi, 0, j)),
        ),
        scratch_shapes=[pltpu.VMEM((m_tile, tn), jnp.float32)],
        compiler_params=pltpu.CompilerParams(
            dimension_semantics=("parallel", "parallel", "arbitrary"),
            vmem_limit_bytes=vmem_limit),
    )(patches, w2d)

    # --- Cross-tile stats reduction + scale/bias (tiny, plain JAX). ---------
    # Padded M rows are zero patches -> conv output 0 -> contribute 0 to both
    # sums, so dividing by the TRUE m keeps the statistics exact.
    inv_m = 1.0 / float(m)
    mean = jnp.sum(stats[:, 0, :], axis=0) * inv_m
    var = jnp.maximum(jnp.sum(stats[:, 1, :], axis=0) * inv_m - mean * mean,
                      0.0)
    scale = gamma_p * jax.lax.rsqrt(var + eps)
    bias = beta_p - mean * scale

    # --- Pass 2: normalise + ReLU. ------------------------------------------
    out2d = pl.pallas_call(
        _bn_relu_kernel,
        out_shape=jax.ShapeDtypeStruct((m_pad, cout_p), out_dtype),
        grid=(num_m, num_n),
        in_specs=[
            pl.BlockSpec((m_tile, tn), lambda mi, j: (mi, j)),
            pl.BlockSpec((1, tn), lambda mi, j: (0, j)),
            pl.BlockSpec((1, tn), lambda mi, j: (0, j)),
        ],
        out_specs=pl.BlockSpec((m_tile, tn), lambda mi, j: (mi, j)),
        compiler_params=pltpu.CompilerParams(
            dimension_semantics=("parallel", "parallel"),
            vmem_limit_bytes=vmem_limit),
    )(conv_out, scale.reshape(1, cout_p), bias.reshape(1, cout_p))

    return out2d[:m, :cout].reshape(n, oh, ow, cout)


def cbr_forward(x_nchw, w_oihw, gamma, beta, **kwargs):
    """NCHW in / NCHW out, matching PyTorch CBR.forward (BN training mode)."""
    x_nhwc = jnp.transpose(x_nchw, (0, 2, 3, 1))
    y = cbr_forward_nhwc(x_nhwc, w_oihw, gamma, beta, **kwargs)
    return jnp.transpose(y, (0, 3, 1, 2))


def cbr_reference(x, w, gamma, beta, *, stride, padding, dilation=1, eps=1e-5):
    """Pure-JAX f32 reference matching PyTorch semantics (BN training mode)."""
    y = jax.lax.conv_general_dilated(
        x, w,
        window_strides=(stride, stride),
        padding=[(padding, padding), (padding, padding)],
        rhs_dilation=(dilation, dilation),
        dimension_numbers=('NCHW', 'OIHW', 'NCHW'))
    mean = jnp.mean(y, axis=(0, 2, 3), keepdims=True)
    var = jnp.mean((y - mean) ** 2, axis=(0, 2, 3), keepdims=True)
    y = (y - mean) * jax.lax.rsqrt(var + eps)
    y = y * gamma.reshape(1, -1, 1, 1) + beta.reshape(1, -1, 1, 1)
    return jnp.maximum(y, 0.0)


if __name__ == "__main__":
    # CBR(in_channel=4, out_channel=8, ks=3, stride=*, padding=1, dilation=1,
    #     bias=False)
    N, CIN, H, W = 2, 4, 16, 16
    COUT, KS, PAD, DIL = 8, 3, 1, 1

    key = jax.random.PRNGKey(0)
    kx, kw, kg, kb = jax.random.split(key, 4)
    x = jax.random.normal(kx, (N, CIN, H, W), jnp.float32)
    conv_w = jax.random.normal(kw, (COUT, CIN, KS, KS), jnp.float32) * 0.1
    bn_gamma = 1.0 + 0.1 * jax.random.normal(kg, (COUT,), jnp.float32)
    bn_beta = 0.1 * jax.random.normal(kb, (COUT,), jnp.float32)

    # (stride, extra kwargs) — the second config forces multiple M tiles to
    # exercise the cross-tile two-pass BN path; the third exercises stride=2.
    configs = [
        (1, dict()),                 # default tiling (single M tile here)
        (1, dict(m_tile=128)),       # 4 M tiles -> multi-tile stats reduction
        (2, dict()),                 # strided conv
    ]

    for stride, kwargs in configs:
        out = cbr_forward(x, conv_w, bn_gamma, bn_beta,
                          stride=stride, padding=PAD, dilation=DIL, **kwargs)
        out = jax.block_until_ready(out)
        ref = jax.block_until_ready(
            cbr_reference(x, conv_w, bn_gamma, bn_beta,
                          stride=stride, padding=PAD, dilation=DIL))
        assert out.shape == ref.shape, (out.shape, ref.shape)
        # bf16 MXU operands + bf16 conv intermediate vs f32 reference.
        assert jnp.allclose(out, ref, atol=3e-2, rtol=3e-2), \
            (stride, kwargs, float(jnp.max(jnp.abs(out - ref))))

    print("KERNEL_OK")
</pallas_src>

<mosaic_0001>
module attributes {stable_mosaic.version = 11 : i64} {
  func.func @_conv_stats_kernel(%arg0: i32, %arg1: i32, %arg2: i32, %arg3: memref<512x128xbf16, #tpu.memory_space<vmem>>, %arg4: memref<128x128xbf16, #tpu.memory_space<vmem>>, %arg5: memref<512x128xbf16, #tpu.memory_space<vmem>>, %arg6: memref<1x2x128xf32, #tpu.memory_space<vmem>>, %arg7: memref<512x128xf32, #tpu.memory_space<vmem>>) attributes {dimension_semantics = [#tpu.dimension_semantics<parallel>, #tpu.dimension_semantics<parallel>, #tpu.dimension_semantics<arbitrary>], iteration_bounds = array<i64: 1, 1, 1>, scalar_prefetch = 0 : i64, scratch_operands = 1 : i64, tpu.core_type = #tpu.core_type<tc>, window_params = [{transform_indices = @transform_0, window_bounds = array<i64: 512, 128>}, {transform_indices = @transform_1, window_bounds = array<i64: 128, 128>}, {transform_indices = @transform_2, window_bounds = array<i64: 512, 128>}, {transform_indices = @transform_3, window_bounds = array<i64: 1, 2, 128>}]} {
    %c0_i32 = arith.constant 0 : i32
    %0 = arith.cmpi eq, %arg2, %c0_i32 : i32
    %1 = arith.extui %0 : i1 to i32
    %c0_i32_0 = arith.constant 0 : i32
    %2 = arith.cmpi ne, %1, %c0_i32_0 : i32
    scf.if %2 {
      %cst_10 = arith.constant 0.000000e+00 : f32
      %12 = vector.broadcast %cst_10 : f32 to vector<512x128xf32>
      %c0_11 = arith.constant 0 : index
      %c0_12 = arith.constant 0 : index
      %13 = vector.load %arg7[%c0_11, %c0_12] : memref<512x128xf32, #tpu.memory_space<vmem>>, vector<512x128xf32>
      tpu.vector_store %arg7[%c0_11, %c0_12], %12 {strides = array<i32>} : memref<512x128xf32, #tpu.memory_space<vmem>>, vector<512x128xf32>,
    } else {
    }
    %c0 = arith.constant 0 : index
    %c0_1 = arith.constant 0 : index
    %3 = vector.load %arg7[%c0, %c0_1] : memref<512x128xf32, #tpu.memory_space<vmem>>, vector<512x128xf32>
    %c0_2 = arith.constant 0 : index
    %c0_3 = arith.constant 0 : index
    %4 = vector.load %arg3[%c0_2, %c0_3] : memref<512x128xbf16, #tpu.memory_space<vmem>>, vector<512x128xbf16>
    %c0_4 = arith.constant 0 : index
    %c0_5 = arith.constant 0 : index
    %5 = vector.load %arg4[%c0_4, %c0_5] : memref<128x128xbf16, #tpu.memory_space<vmem>>, vector<128x128xbf16>
    %cst = arith.constant dense<0.000000e+00> : vector<512x128xf32>
    %6 = tpu.matmul %4, %5, %cst {dimension_numbers = #tpu.dot_dimension_numbers<[1], [0], [0], [1], [0, 0, 1, 1], [], []>} : vector<512x128xbf16>, vector<128x128xbf16>, vector<512x128xf32> -> vector<512x128xf32>
    %7 = arith.addf %3, %6 : vector<512x128xf32>
    %c0_6 = arith.constant 0 : index
    %c0_7 = arith.constant 0 : index
    %8 = vector.load %arg7[%c0_6, %c0_7] : memref<512x128xf32, #tpu.memory_space<vmem>>, vector<512x128xf32>
    tpu.vector_store %arg7[%c0_6, %c0_7], %7 {strides = array<i32>} : memref<512x128xf32, #tpu.memory_space<vmem>>, vector<512x128xf32>,
    %c0_i32_8 = arith.constant 0 : i32
    %9 = arith.cmpi eq, %arg2, %c0_i32_8 : i32
    %10 = arith.extui %9 : i1 to i32
    %c0_i32_9 = arith.constant 0 : i32
    %11 = arith.cmpi ne, %10, %c0_i32_9 : i32
    scf.if %11 {
      %c0_10 = arith.constant 0 : index
      %c0_11 = arith.constant 0 : index
      %12 = vector.load %arg7[%c0_10, %c0_11] : memref<512x128xf32, #tpu.memory_space<vmem>>, vector<512x128xf32>
      %13 = arith.truncf %12 : vector<512x128xf32> to vector<512x128xbf16>
      %c0_12 = arith.constant 0 : index
      %c0_13 = arith.constant 0 : index
      %14 = vector.load %arg5[%c0_12, %c0_13] : memref<512x128xbf16, #tpu.memory_space<vmem>>, vector<512x128xbf16>
      tpu.vector_store %arg5[%c0_12, %c0_13], %13 {strides = array<i32>} : memref<512x128xbf16, #tpu.memory_space<vmem>>, vector<512x128xbf16>,
      %cst_14 = arith.constant dense<0.000000e+00> : vector<128xf32>
      %15 = vector.multi_reduction <add>, %12, %cst_14 [0] : vector<512x128xf32> to vector<128xf32>
      %16 = vector.shape_cast %15 : vector<128xf32> to vector<1x128xf32>
      %17 = arith.mulf %12, %12 : vector<512x128xf32>
      %cst_15 = arith.constant dense<0.000000e+00> : vector<128xf32>
      %18 = vector.multi_reduction <add>, %17, %cst_15 [0] : vector<512x128xf32> to vector<128xf32>
      %19 = vector.shape_cast %18 : vector<128xf32> to vector<1x128xf32>
      %20 = tpu.concatenate %16, %19 in 0 : vector<1x128xf32>, vector<1x128xf32> -> vector<2x128xf32>
      %21 = vector.shape_cast %20 : vector<2x128xf32> to vector<1x2x128xf32>
      %c0_16 = arith.constant 0 : index
      %c0_17 = arith.constant 0 : index
      %c0_18 = arith.constant 0 : index
      %22 = vector.load %arg6[%c0_16, %c0_17, %c0_18] : memref<1x2x128xf32, #tpu.memory_space<vmem>>, vector<1x2x128xf32>
      tpu.vector_store %arg6[%c0_16, %c0_17, %c0_18], %21 {strides = array<i32>} : memref<1x2x128xf32, #tpu.memory_space<vmem>>, vector<1x2x128xf32>,
    } else {
    }
    return
  }
  func.func @transform_0(%arg0: i32, %arg1: i32, %arg2: i32) -> (i32, i32) {
    %c0_i32 = arith.constant 0 : i32
    return %arg0, %arg2 : i32, i32
  }
  func.func @transform_1(%arg0: i32, %arg1: i32, %arg2: i32) -> (i32, i32) {
    %c0_i32 = arith.constant 0 : i32
    return %arg2, %arg1 : i32, i32
  }
  func.func @transform_2(%arg0: i32, %arg1: i32, %arg2: i32) -> (i32, i32) {
    %c0_i32 = arith.constant 0 : i32
    return %arg0, %arg1 : i32, i32
  }
  func.func @transform_3(%arg0: i32, %arg1: i32, %arg2: i32) -> (i32, i32, i32) {
    %c0_i32 = arith.constant 0 : i32
    %c0_i32_0 = arith.constant 0 : i32
    return %arg0, %c0_i32, %arg1 : i32, i32, i32
  }
}

</mosaic_0001>

<llo_original>
// kernel: tpu_custom_call.1
$region0: #{tpu_custom_call.1}
  #allocation0 [shape = 'u32[]', space=smem, size = 0x4, offset = 0x4, fixed_abs, tag = 'smem constant byte address 0x4 - core index']
  #allocation1 [shape = 'u32[144,128]{1,0:T(1,128)}', space=vmem, size = 0x12000, scoped, tag = 'internal scratch']
  #allocation2 [shape = 'f32[512,128]{1,0:T(8,128)}', space=vmem, size = 0x40000, scoped, tag = 'scratch operand']
  %s0 = inlined_call_operand.hbm [shape: bf16[512,128], index: 0, kind: input, shape index: {}]
  %s1 = inlined_call_operand.hbm [shape: bf16[128,128], index: 1, kind: input, shape index: {}]
  %s2 = inlined_call_operand.hbm [shape: bf16[512,128], index: 2, kind: output, shape index: {0}]
  %s3 = inlined_call_operand.hbm [shape: f32[1,2,128], index: 3, kind: output, shape index: {1}]
  %4 = xla_tuple %s2, %s3
  %s5 = sld [smem:[#allocation0]]
  $region42: #{tpu_custom_call.1} parent=0
    _
  %s7 = ssub.s32 1, %s5
  %s8 = scalar_select 0, %s7, %s5
  $region1: #{tpu_custom_call.1} parent=0
    #allocation3 [shape = 'u8[131072]{0}', space=vmem, size = 0x20000, scoped, tag = 'input window, operand 0, single buffered']
    #allocation4 [shape = 's32[1]{0}', space=sflag, size = 0x4, scoped, tag = 'scoped memory for tpu_custom_call.1']
    #allocation5 [shape = 's32[1]{0}', space=sflag, size = 0x4, scoped, tag = 'scoped memory for tpu_custom_call.1']
    #allocation6 [shape = 'u8[32768]{0}', space=vmem, size = 0x8000, scoped, tag = 'input window, operand 1, single buffered']
    #allocation7 [shape = 's32[1]{0}', space=sflag, size = 0x4, scoped, tag = 'scoped memory for tpu_custom_call.1']
    #allocation8 [shape = 'u8[131072]{0}', space=vmem, size = 0x20000, scoped, tag = 'output window, operand 0, single buffered']
    #allocation9 [shape = 'u8[1024]{0}', space=vmem, size = 0x400, scoped, tag = 'output window, operand 1, single buffered']
    #allocation10 [shape = 's32[1]{0}', space=sflag, size = 0x4, scoped, tag = 'scoped memory for tpu_custom_call.1']
    %9 = vsyncpa [#allocation4], 0
    %10 = vsyncpa [#allocation7], 0
    %11 = vsyncpa [#allocation5], 0
    %12 = vsyncpa [#allocation10], 0
    // Predicated region
    $region2: #{tpu_custom_call.1} parent=1 // pred_check
      _
    $region3: #{tpu_custom_call.1} parent=1 // pred_check_branch
      %14 = sbr.rel (0) target = $region5
    $region4: #{tpu_custom_call.1} parent=1 // pred_region
      %s16 = ssub.s32 4096, 4096
      %17 = vsyncadd [#allocation4], %s16
      %s18 = sshll.u32 [#allocation3], 4
      %s19 = int_to_ptr.vmem [resolvable:$true] %s18
      %24 = dma.hbm_to_vmem [thread:$0]  %s0, 4096, %s19, [#allocation4], 64, 64, 4
    $region5: #{tpu_custom_call.1} parent=1 // pred_fallthru
      _
    // Predicated region
    $region6: #{tpu_custom_call.1} parent=1 // pred_check
      _
    $region7: #{tpu_custom_call.1} parent=1 // pred_check_branch
      %26 = sbr.rel (0) target = $region9
    $region8: #{tpu_custom_call.1} parent=1 // pred_region
      %s28 = ssub.s32 1024, 1024
      %29 = vsyncadd [#allocation7], %s28
      %s30 = sshll.u32 [#allocation6], 4
      %s31 = int_to_ptr.vmem [resolvable:$true] %s30
      %36 = dma.hbm_to_vmem [thread:$0]  %s1, 1024, %s31, [#allocation7], 64, 64, 4
    $region9: #{tpu_custom_call.1} parent=1 // pred_fallthru
      _
    // Predicated region
    $region10: #{tpu_custom_call.1} parent=1 // pred_check
      _
    $region11: #{tpu_custom_call.1} parent=1 // pred_check_branch
      %38 = sbr.rel (0) target = $region13
    $region12: #{tpu_custom_call.1} parent=1 // pred_region
      %39 = dma.done [#allocation4], 4096
    $region13: #{tpu_custom_call.1} parent=1 // pred_fallthru
      _
    // Predicated region
    $region14: #{tpu_custom_call.1} parent=1 // pred_check
      _
    $region15: #{tpu_custom_call.1} parent=1 // pred_check_branch
      %41 = sbr.rel (0) target = $region17
    $region16: #{tpu_custom_call.1} parent=1 // pred_region
      %42 = dma.done [#allocation7], 1024
    $region17: #{tpu_custom_call.1} parent=1 // pred_fallthru
      _
    %p44 = scmp.eq.s32.totalorder 0, 0
    // Predicated region
    $region18: #{tpu_custom_call.1} parent=1 // pred_check
      %p45 = pneg %p44
    $region19: #{tpu_custom_call.1} parent=1 // pred_check_branch
      %47 = sbr.rel (%p45) target = $region21
    $region20: #{tpu_custom_call.1} parent=1 // pred_region
      %48 = vst [vmem:[#allocation2] sm:$0xff] 0.0
      %49 = vst [vmem:[#allocation2 + $0x8] sm:$0xff] 0.0
      %50 = vst [vmem:[#allocation2 + $0x10] sm:$0xff] 0.0
      %51 = vst [vmem:[#allocation2 + $0x18] sm:$0xff] 0.0
      %52 = vst [vmem:[#allocation2 + $0x20] sm:$0xff] 0.0
      %53 = vst [vmem:[#allocation2 + $0x28] sm:$0xff] 0.0
      %54 = vst [vmem:[#allocation2 + $0x30] sm:$0xff] 0.0
      %55 = vst [vmem:[#allocation2 + $0x38] sm:$0xff] 0.0
      %56 = vst [vmem:[#allocation2 + $0x40] sm:$0xff] 0.0
      %57 = vst [vmem:[#allocation2 + $0x48] sm:$0xff] 0.0
      %58 = vst [vmem:[#allocation2 + $0x50] sm:$0xff] 0.0
      %59 = vst [vmem:[#allocation2 + $0x58] sm:$0xff] 0.0
      %60 = vst [vmem:[#allocation2 + $0x60] sm:$0xff] 0.0
      %61 = vst [vmem:[#allocation2 + $0x68] sm:$0xff] 0.0
      %62 = vst [vmem:[#allocation2 + $0x70] sm:$0xff] 0.0
      %63 = vst [vmem:[#allocation2 + $0x78] sm:$0xff] 0.0
      %64 = vst [vmem:[#allocation2 + $0x80] sm:$0xff] 0.0
      %65 = vst [vmem:[#allocation2 + $0x88] sm:$0xff] 0.0
      %66 = vst [vmem:[#allocation2 + $0x90] sm:$0xff] 0.0
      %67 = vst [vmem:[#allocation2 + $0x98] sm:$0xff] 0.0
      %68 = vst [vmem:[#allocation2 + $0xa0] sm:$0xff] 0.0
      %69 = vst [vmem:[#allocation2 + $0xa8] sm:$0xff] 0.0
      %70 = vst [vmem:[#allocation2 + $0xb0] sm:$0xff] 0.0
      %71 = vst [vmem:[#allocation2 + $0xb8] sm:$0xff] 0.0
      %72 = vst [vmem:[#allocation2 + $0xc0] sm:$0xff] 0.0
      %73 = vst [vmem:[#allocation2 + $0xc8] sm:$0xff] 0.0
      %74 = vst [vmem:[#allocation2 + $0xd0] sm:$0xff] 0.0
      %75 = vst [vmem:[#allocation2 + $0xd8] sm:$0xff] 0.0
      %76 = vst [vmem:[#allocation2 + $0xe0] sm:$0xff] 0.0
      %77 = vst [vmem:[#allocation2 + $0xe8] sm:$0xff] 0.0
      %78 = vst [vmem:[#allocation2 + $0xf0] sm:$0xff] 0.0
      %79 = vst [vmem:[#allocation2 + $0xf8] sm:$0xff] 0.0
      %80 = vst [vmem:[#allocation2 + $0x100] sm:$0xff] 0.0
      %81 = vst [vmem:[#allocation2 + $0x108] sm:$0xff] 0.0
      %82 = vst [vmem:[#allocation2 + $0x110] sm:$0xff] 0.0
      %83 = vst [vmem:[#allocation2 + $0x118] sm:$0xff] 0.0
      %84 = vst [vmem:[#allocation2 + $0x120] sm:$0xff] 0.0
      %85 = vst [vmem:[#allocation2 + $0x128] sm:$0xff] 0.0
      %86 = vst [vmem:[#allocation2 + $0x130] sm:$0xff] 0.0
      %87 = vst [vmem:[#allocation2 + $0x138] sm:$0xff] 0.0
      %88 = vst [vmem:[#allocation2 + $0x140] sm:$0xff] 0.0
      %89 = vst [vmem:[#allocation2 + $0x148] sm:$0xff] 0.0
      %90 = vst [vmem:[#allocation2 + $0x150] sm:$0xff] 0.0
      %91 = vst [vmem:[#allocation2 + $0x158] sm:$0xff] 0.0
      %92 = vst [vmem:[#allocation2 + $0x160] sm:$0xff] 0.0
      %93 = vst [vmem:[#allocation2 + $0x168] sm:$0xff] 0.0
      %94 = vst [vmem:[#allocation2 + $0x170] sm:$0xff] 0.0
      %95 = vst [vmem:[#allocation2 + $0x178] sm:$0xff] 0.0
      %96 = vst [vmem:[#allocation2 + $0x180] sm:$0xff] 0.0
      %97 = vst [vmem:[#allocation2 + $0x188] sm:$0xff] 0.0
      %98 = vst [vmem:[#allocation2 + $0x190] sm:$0xff] 0.0
      %99 = vst [vmem:[#allocation2 + $0x198] sm:$0xff] 0.0
      %100 = vst [vmem:[#allocation2 + $0x1a0] sm:$0xff] 0.0
      %101 = vst [vmem:[#allocation2 + $0x1a8] sm:$0xff] 0.0
      %102 = vst [vmem:[#allocation2 + $0x1b0] sm:$0xff] 0.0
      %103 = vst [vmem:[#allocation2 + $0x1b8] sm:$0xff] 0.0
      %104 = vst [vmem:[#allocation2 + $0x1c0] sm:$0xff] 0.0
      %105 = vst [vmem:[#allocation2 + $0x1c8] sm:$0xff] 0.0
      %106 = vst [vmem:[#allocation2 + $0x1d0] sm:$0xff] 0.0
      %107 = vst [vmem:[#allocation2 + $0x1d8] sm:$0xff] 0.0
      %108 = vst [vmem:[#allocation2 + $0x1e0] sm:$0xff] 0.0
      %109 = vst [vmem:[#allocation2 + $0x1e8] sm:$0xff] 0.0
      %110 = vst [vmem:[#allocation2 + $0x1f0] sm:$0xff] 0.0
      %111 = vst [vmem:[#allocation2 + $0x1f8] sm:$0xff] 0.0
    $region21: #{tpu_custom_call.1} parent=1 // pred_fallthru
      _
    %v112 = vld [vmem:[#allocation2] sm:$0xff]
    %v113 = vld [vmem:[#allocation2 + $0x8] sm:$0xff]
    %v114 = vld [vmem:[#allocation2 + $0x10] sm:$0xff]
    %v115 = vld [vmem:[#allocation2 + $0x18] sm:$0xff]
    %v116 = vld [vmem:[#allocation2 + $0x20] sm:$0xff]
    %v117 = vld [vmem:[#allocation2 + $0x28] sm:$0xff]
    %v118 = vld [vmem:[#allocation2 + $0x30] sm:$0xff]
    %v119 = vld [vmem:[#allocation2 + $0x38] sm:$0xff]
    %v120 = vld [vmem:[#allocation2 + $0x40] sm:$0xff]
    %v121 = vld [vmem:[#allocation2 + $0x48] sm:$0xff]
    %v122 = vld [vmem:[#allocation2 + $0x50] sm:$0xff]
    %v123 = vld [vmem:[#allocation2 + $0x58] sm:$0xff]
    %v124 = vld [vmem:[#allocation2 + $0x60] sm:$0xff]
    %v125 = vld [vmem:[#allocation2 + $0x68] sm:$0xff]
    %v126 = vld [vmem:[#allocation2 + $0x70] sm:$0xff]
    %v127 = vld [vmem:[#allocation2 + $0x78] sm:$0xff]
    %v128 = vld [vmem:[#allocation2 + $0x80] sm:$0xff]
    %v129 = vld [vmem:[#allocation2 + $0x88] sm:$0xff]
    %v130 = vld [vmem:[#allocation2 + $0x90] sm:$0xff]
    %v131 = vld [vmem:[#allocation2 + $0x98] sm:$0xff]
    %v132 = vld [vmem:[#allocation2 + $0xa0] sm:$0xff]
    %v133 = vld [vmem:[#allocation2 + $0xa8] sm:$0xff]
    %v134 = vld [vmem:[#allocation2 + $0xb0] sm:$0xff]
    %v135 = vld [vmem:[#allocation2 + $0xb8] sm:$0xff]
    %v136 = vld [vmem:[#allocation2 + $0xc0] sm:$0xff]
    %v137 = vld [vmem:[#allocation2 + $0xc8] sm:$0xff]
    %v138 = vld [vmem:[#allocation2 + $0xd0] sm:$0xff]
    %v139 = vld [vmem:[#allocation2 + $0xd8] sm:$0xff]
    %v140 = vld [vmem:[#allocation2 + $0xe0] sm:$0xff]
    %v141 = vld [vmem:[#allocation2 + $0xe8] sm:$0xff]
    %v142 = vld [vmem:[#allocation2 + $0xf0] sm:$0xff]
    %v143 = vld [vmem:[#allocation2 + $0xf8] sm:$0xff]
    %v144 = vld [vmem:[#allocation2 + $0x100] sm:$0xff]
    %v145 = vld [vmem:[#allocation2 + $0x108] sm:$0xff]
    %v146 = vld [vmem:[#allocation2 + $0x110] sm:$0xff]
    %v147 = vld [vmem:[#allocation2 + $0x118] sm:$0xff]
    %v148 = vld [vmem:[#allocation2 + $0x120] sm:$0xff]
    %v149 = vld [vmem:[#allocation2 + $0x128] sm:$0xff]
    %v150 = vld [vmem:[#allocation2 + $0x130] sm:$0xff]
    %v151 = vld [vmem:[#allocation2 + $0x138] sm:$0xff]
    %v152 = vld [vmem:[#allocation2 + $0x140] sm:$0xff]
    %v153 = vld [vmem:[#allocation2 + $0x148] sm:$0xff]
    %v154 = vld [vmem:[#allocation2 + $0x150] sm:$0xff]
    %v155 = vld [vmem:[#allocation2 + $0x158] sm:$0xff]
    %v156 = vld [vmem:[#allocation2 + $0x160] sm:$0xff]
    %v157 = vld [vmem:[#allocation2 + $0x168] sm:$0xff]
    %v158 = vld [vmem:[#allocation2 + $0x170] sm:$0xff]
    %v159 = vld [vmem:[#allocation2 + $0x178] sm:$0xff]
    %v160 = vld [vmem:[#allocation2 + $0x180] sm:$0xff]
    %v161 = vld [vmem:[#allocation2 + $0x188] sm:$0xff]
    %v162 = vld [vmem:[#allocation2 + $0x190] sm:$0xff]
    %v163 = vld [vmem:[#allocation2 + $0x198] sm:$0xff]
    %v164 = vld [vmem:[#allocation2 + $0x1a0] sm:$0xff]
    %v165 = vld [vmem:[#allocation2 + $0x1a8] sm:$0xff]
    %v166 = vld [vmem:[#allocation2 + $0x1b0] sm:$0xff]
    %v167 = vld [vmem:[#allocation2 + $0x1b8] sm:$0xff]
    %v168 = vld [vmem:[#allocation2 + $0x1c0] sm:$0xff]
    %v169 = vld [vmem:[#allocation2 + $0x1c8] sm:$0xff]
    %v170 = vld [vmem:[#allocation2 + $0x1d0] sm:$0xff]
    %v171 = vld [vmem:[#allocation2 + $0x1d8] sm:$0xff]
    %v172 = vld [vmem:[#allocation2 + $0x1e0] sm:$0xff]
    %v173 = vld [vmem:[#allocation2 + $0x1e8] sm:$0xff]
    %v174 = vld [vmem:[#allocation2 + $0x1f0] sm:$0xff]
    %v175 = vld [vmem:[#allocation2 + $0x1f8] sm:$0xff]
    %v176 = vld [vmem:[#allocation3] sm:$0xf]
    %v177 = vld [vmem:[#allocation3 + $0x4] sm:$0xf]
    %v178 = vld [vmem:[#allocation3 + $0x8] sm:$0xf]
    %v179 = vld [vmem:[#allocation3 + $0xc] sm:$0xf]
    %v180 = vld [vmem:[#allocation3 + $0x10] sm:$0xf]
    %v181 = vld [vmem:[#allocation3 + $0x14] sm:$0xf]
    %v182 = vld [vmem:[#allocation3 + $0x18] sm:$0xf]
    %v183 = vld [vmem:[#allocation3 + $0x1c] sm:$0xf]
    %v184 = vld [vmem:[#allocation3 + $0x20] sm:$0xf]
    %v185 = vld [vmem:[#allocation3 + $0x24] sm:$0xf]
    %v186 = vld [vmem:[#allocation3 + $0x28] sm:$0xf]
    %v187 = vld [vmem:[#allocation3 + $0x2c] sm:$0xf]
    %v188 = vld [vmem:[#allocation3 + $0x30] sm:$0xf]
    %v189 = vld [vmem:[#allocation3 + $0x34] sm:$0xf]
    %v190 = vld [vmem:[#allocation3 + $0x38] sm:$0xf]
    %v191 = vld [vmem:[#allocation3 + $0x3c] sm:$0xf]
    %v192 = vld [vmem:[#allocation3 + $0x40] sm:$0xf]
    %v193 = vld [vmem:[#allocation3 + $0x44] sm:$0xf]
    %v194 = vld [vmem:[#allocation3 + $0x48] sm:$0xf]
    %v195 = vld [vmem:[#allocation3 + $0x4c] sm:$0xf]
    %v196 = vld [vmem:[#allocation3 + $0x50] sm:$0xf]
    %v197 = vld [vmem:[#allocation3 + $0x54] sm:$0xf]
    %v198 = vld [vmem:[#allocation3 + $0x58] sm:$0xf]
    %v199 = vld [vmem:[#allocation3 + $0x5c] sm:$0xf]
    %v200 = vld [vmem:[#allocation3 + $0x60] sm:$0xf]
    %v201 = vld [vmem:[#allocation3 + $0x64] sm:$0xf]
    %v202 = vld [vmem:[#allocation3 + $0x68] sm:$0xf]
    %v203 = vld [vmem:[#allocation3 + $0x6c] sm:$0xf]
    %v204 = vld [vmem:[#allocation3 + $0x70] sm:$0xf]
    %v205 = vld [vmem:[#allocation3 + $0x74] sm:$0xf]
    %v206 = vld [vmem:[#allocation3 + $0x78] sm:$0xf]
    %v207 = vld [vmem:[#allocation3 + $0x7c] sm:$0xf]
    %v208 = vld [vmem:[#allocation3 + $0x80] sm:$0xf]
    %v209 = vld [vmem:[#allocation3 + $0x84] sm:$0xf]
    %v210 = vld [vmem:[#allocation3 + $0x88] sm:$0xf]
    %v211 = vld [vmem:[#allocation3 + $0x8c] sm:$0xf]
    %v212 = vld [vmem:[#allocation3 + $0x90] sm:$0xf]
    %v213 = vld [vmem:[#allocation3 + $0x94] sm:$0xf]
    %v214 = vld [vmem:[#allocation3 + $0x98] sm:$0xf]
    %v215 = vld [vmem:[#allocation3 + $0x9c] sm:$0xf]
    %v216 = vld [vmem:[#allocation3 + $0xa0] sm:$0xf]
    %v217 = vld [vmem:[#allocation3 + $0xa4] sm:$0xf]
    %v218 = vld [vmem:[#allocation3 + $0xa8] sm:$0xf]
    %v219 = vld [vmem:[#allocation3 + $0xac] sm:$0xf]
    %v220 = vld [vmem:[#allocation3 + $0xb0] sm:$0xf]
    %v221 = vld [vmem:[#allocation3 + $0xb4] sm:$0xf]
    %v222 = vld [vmem:[#allocation3 + $0xb8] sm:$0xf]
    %v223 = vld [vmem:[#allocation3 + $0xbc] sm:$0xf]
    %v224 = vld [vmem:[#allocation3 + $0xc0] sm:$0xf]
    %v225 = vld [vmem:[#allocation3 + $0xc4] sm:$0xf]
    %v226 = vld [vmem:[#allocation3 + $0xc8] sm:$0xf]
    %v227 = vld [vmem:[#allocation3 + $0xcc] sm:$0xf]
    %v228 = vld [vmem:[#allocation3 + $0xd0] sm:$0xf]
    %v229 = vld [vmem:[#allocation3 + $0xd4] sm:$0xf]
    %v230 = vld [vmem:[#allocation3 + $0xd8] sm:$0xf]
    %v231 = vld [vmem:[#allocation3 + $0xdc] sm:$0xf]
    %v232 = vld [vmem:[#allocation3 + $0xe0] sm:$0xf]
    %v233 = vld [vmem:[#allocation3 + $0xe4] sm:$0xf]
    %v234 = vld [vmem:[#allocation3 + $0xe8] sm:$0xf]
    %v235 = vld [vmem:[#allocation3 + $0xec] sm:$0xf]
    %v236 = vld [vmem:[#allocation3 + $0xf0] sm:$0xf]
    %v237 = vld [vmem:[#allocation3 + $0xf4] sm:$0xf]
    %v238 = vld [vmem:[#allocation3 + $0xf8] sm:$0xf]
    %v239 = vld [vmem:[#allocation3 + $0xfc] sm:$0xf]
    %v240 = vld [vmem:[#allocation6] sm:$0xf]
    %v241 = vld [vmem:[#allocation6 + $0x4] sm:$0xf]
    %v242 = vld [vmem:[#allocation6 + $0x8] sm:$0xf]
    %v243 = vld [vmem:[#allocation6 + $0xc] sm:$0xf]
    %v244 = vld [vmem:[#allocation6 + $0x10] sm:$0xf]
    %v245 = vld [vmem:[#allocation6 + $0x14] sm:$0xf]
    %v246 = vld [vmem:[#allocation6 + $0x18] sm:$0xf]
    %v247 = vld [vmem:[#allocation6 + $0x1c] sm:$0xf]
    %v248 = vld [vmem:[#allocation6 + $0x20] sm:$0xf]
    %v249 = vld [vmem:[#allocation6 + $0x24] sm:$0xf]
    %v250 = vld [vmem:[#allocation6 + $0x28] sm:$0xf]
    %v251 = vld [vmem:[#allocation6 + $0x2c] sm:$0xf]
    %v252 = vld [vmem:[#allocation6 + $0x30] sm:$0xf]
    %v253 = vld [vmem:[#allocation6 + $0x34] sm:$0xf]
    %v254 = vld [vmem:[#allocation6 + $0x38] sm:$0xf]
    %v255 = vld [vmem:[#allocation6 + $0x3c] sm:$0xf]
    %v320 = vunpack.c.l.b16 %v176
    %v321 = vunpack.c.l.b16 %v177
    %v322 = vunpack.c.l.b16 %v178
    %v323 = vunpack.c.l.b16 %v179
    %v324 = vunpack.c.l.b16 %v180
    %v325 = vunpack.c.l.b16 %v181
    %v326 = vunpack.c.l.b16 %v182
    %v327 = vunpack.c.l.b16 %v183
    %v328 = vunpack.c.l.b16 %v184
    %v329 = vunpack.c.l.b16 %v185
    %v330 = vunpack.c.l.b16 %v186
    %v331 = vunpack.c.l.b16 %v187
    %v332 = vunpack.c.l.b16 %v188
    %v333 = vunpack.c.l.b16 %v189
    %v334 = vunpack.c.l.b16 %v190
    %v335 = vunpack.c.l.b16 %v191
    %v336 = vunpack.c.l.b16 %v192
    %v337 = vunpack.c.l.b16 %v193
    %v338 = vunpack.c.l.b16 %v194
    %v339 = vunpack.c.l.b16 %v195
    %v340 = vunpack.c.l.b16 %v196
    %v341 = vunpack.c.l.b16 %v197
    %v342 = vunpack.c.l.b16 %v198
    %v343 = vunpack.c.l.b16 %v199
    %v344 = vunpack.c.l.b16 %v200
    %v345 = vunpack.c.l.b16 %v201
    %v346 = vunpack.c.l.b16 %v202
    %v347 = vunpack.c.l.b16 %v203
    %v348 = vunpack.c.l.b16 %v204
    %v349 = vunpack.c.l.b16 %v205
    %v350 = vunpack.c.l.b16 %v206
    %v351 = vunpack.c.l.b16 %v207
    %v352 = vunpack.c.l.b16 %v208
    %v353 = vunpack.c.l.b16 %v209
    %v354 = vunpack.c.l.b16 %v210
    %v355 = vunpack.c.l.b16 %v211
    %v356 = vunpack.c.l.b16 %v212
    %v357 = vunpack.c.l.b16 %v213
    %v358 = vunpack.c.l.b16 %v214
    %v359 = vunpack.c.l.b16 %v215
    %v360 = vunpack.c.l.b16 %v216
    %v361 = vunpack.c.l.b16 %v217
    %v362 = vunpack.c.l.b16 %v218
    %v363 = vunpack.c.l.b16 %v219
    %v364 = vunpack.c.l.b16 %v220
    %v365 = vunpack.c.l.b16 %v221
    %v366 = vunpack.c.l.b16 %v222
    %v367 = vunpack.c.l.b16 %v223
    %v368 = vunpack.c.l.b16 %v224
    %v369 = vunpack.c.l.b16 %v225
    %v370 = vunpack.c.l.b16 %v226
    %v371 = vunpack.c.l.b16 %v227
    %v372 = vunpack.c.l.b16 %v228
    %v373 = vunpack.c.l.b16 %v229
    %v374 = vunpack.c.l.b16 %v230
    %v375 = vunpack.c.l.b16 %v231
    %v376 = vunpack.c.l.b16 %v232
    %v377 = vunpack.c.l.b16 %v233
    %v378 = vunpack.c.l.b16 %v234
    %v379 = vunpack.c.l.b16 %v235
    %v380 = vunpack.c.l.b16 %v236
    %v381 = vunpack.c.l.b16 %v237
    %v382 = vunpack.c.l.b16 %v238
    %v383 = vunpack.c.l.b16 %v239
    %v384 = vpack.c.b16 %v321, %v320
    %v385 = vpack.c.b16 %v323, %v322
    %v386 = vpack.c.b16 %v325, %v324
    %v387 = vpack.c.b16 %v327, %v326
    %v388 = vpack.c.b16 %v329, %v328
    %v389 = vpack.c.b16 %v331, %v330
    %v390 = vpack.c.b16 %v333, %v332
    %v391 = vpack.c.b16 %v335, %v334
    %v392 = vpack.c.b16 %v337, %v336
    %v393 = vpack.c.b16 %v339, %v338
    %v394 = vpack.c.b16 %v341, %v340
    %v395 = vpack.c.b16 %v343, %v342
    %v396 = vpack.c.b16 %v345, %v344
    %v397 = vpack.c.b16 %v347, %v346
    %v398 = vpack.c.b16 %v349, %v348
    %v399 = vpack.c.b16 %v351, %v350
    %v400 = vpack.c.b16 %v353, %v352
    %v401 = vpack.c.b16 %v355, %v354
    %v402 = vpack.c.b16 %v357, %v356
    %v403 = vpack.c.b16 %v359, %v358
    %v404 = vpack.c.b16 %v361, %v360
    %v405 = vpack.c.b16 %v363, %v362
    %v406 = vpack.c.b16 %v365, %v364
    %v407 = vpack.c.b16 %v367, %v366
    %v408 = vpack.c.b16 %v369, %v368
    %v409 = vpack.c.b16 %v371, %v370
    %v410 = vpack.c.b16 %v373, %v372
    %v411 = vpack.c.b16 %v375, %v374
    %v412 = vpack.c.b16 %v377, %v376
    %v413 = vpack.c.b16 %v379, %v378
    %v414 = vpack.c.b16 %v381, %v380
    %v415 = vpack.c.b16 %v383, %v382
    %v464 = vunpack.c.l.b16 %v240
    %v465 = vunpack.c.l.b16 %v241
    %v466 = vunpack.c.l.b16 %v242
    %v467 = vunpack.c.l.b16 %v243
    %v468 = vunpack.c.l.b16 %v244
    %v469 = vunpack.c.l.b16 %v245
    %v470 = vunpack.c.l.b16 %v246
    %v471 = vunpack.c.l.b16 %v247
    %v472 = vunpack.c.l.b16 %v248
    %v473 = vunpack.c.l.b16 %v249
    %v474 = vunpack.c.l.b16 %v250
    %v475 = vunpack.c.l.b16 %v251
    %v476 = vunpack.c.l.b16 %v252
    %v477 = vunpack.c.l.b16 %v253
    %v478 = vunpack.c.l.b16 %v254
    %v479 = vunpack.c.l.b16 %v255
    %v480 = vpack.c.b16 %v465, %v464
    %v481 = vpack.c.b16 %v467, %v466
    %v482 = vpack.c.b16 %v469, %v468
    %v483 = vpack.c.b16 %v471, %v470
    %v484 = vpack.c.b16 %v473, %v472
    %v485 = vpack.c.b16 %v475, %v474
    %v486 = vpack.c.b16 %v477, %v476
    %v487 = vpack.c.b16 %v479, %v478
    %496 = vmatprep.subr.bf16.mxu0 0
    %497 = vmatpush1.bf16.msra.mxu0 %v480
    %498 = vmatprep.subr.bf16.mxu0 0
    %499 = vmatpush1.bf16.msra.mxu0 %v481
    %500 = vmatprep.subr.bf16.mxu0 0
    %501 = vmatpush1.bf16.msra.mxu0 %v482
    %502 = vmatprep.subr.bf16.mxu0 0
    %503 = vmatpush1.bf16.msra.mxu0 %v483
    %504 = vmatprep.subr.bf16.mxu0 0
    %505 = vmatpush1.bf16.msra.mxu0 %v484
    %506 = vmatprep.subr.bf16.mxu0 0
    %507 = vmatpush1.bf16.msra.mxu0 %v485
    %508 = vmatprep.subr.bf16.mxu0 0
    %509 = vmatpush1.bf16.msra.mxu0 %v486
    %510 = vmatprep.subr.bf16.mxu0 0
    %511 = vmatpush1.bf16.msra.mxu0 %v487
    %512 = vmatprep.subr.bf16.mxu0 0
    %513 = vmatpush1.bf16.msra.mxu0 0
    %514 = vmatprep.subr.bf16.mxu0 0
    %515 = vmatpush1.bf16.msra.mxu0 0
    %516 = vmatprep.subr.bf16.mxu0 0
    %517 = vmatpush1.bf16.msra.mxu0 0
    %518 = vmatprep.subr.bf16.mxu0 0
    %519 = vmatpush1.bf16.msra.mxu0 0
    %520 = vmatprep.subr.bf16.mxu0 0
    %521 = vmatpush1.bf16.msra.mxu0 0
    %522 = vmatprep.subr.bf16.mxu0 0
    %523 = vmatpush1.bf16.msra.mxu0 0
    %524 = vmatprep.subr.bf16.mxu0 0
    %525 = vmatpush1.bf16.msra.mxu0 0
    %526 = vmatprep.subr.bf16.mxu0 0
    %527 = vmatpush1.bf16.msra.mxu0 0
    %528 = vmatprep.mubr.bf16.mxu0 0
    %529 = vmatmul.mubr.bf16.gmra.mrb[0].mxu0 %v384
    %v530 = vpop.f32.mrb[0].mxu0
    %v531 = vadd.f32 0.0, %v530
    %v532 = vpop.f32.mrb[0].mxu0
    %v533 = vpop.f32.mrb[0].mxu0
    %v534 = vadd.f32 0.0, %v533
    %v535 = vpop.f32.mrb[0].mxu0
    %536 = vmatprep.mubr.bf16.mxu0 0
    %537 = vmatmul.mubr.bf16.gmra.mrb[0].mxu0 %v385
    %v538 = vpop.f32.mrb[0].mxu0
    %v539 = vadd.f32 0.0, %v538
    %v540 = vpop.f32.mrb[0].mxu0
    %v541 = vpop.f32.mrb[0].mxu0
    %v542 = vadd.f32 0.0, %v541
    %v543 = vpop.f32.mrb[0].mxu0
    %544 = vmatprep.mubr.bf16.mxu0 0
    %545 = vmatmul.mubr.bf16.gmra.mrb[0].mxu0 %v386
    %v546 = vpop.f32.mrb[0].mxu0
    %v547 = vadd.f32 0.0, %v546
    %v548 = vpop.f32.mrb[0].mxu0
    %v549 = vpop.f32.mrb[0].mxu0
    %v550 = vadd.f32 0.0, %v549
    %v551 = vpop.f32.mrb[0].mxu0
    %552 = vmatprep.mubr.bf16.mxu0 0
    %553 = vmatmul.mubr.bf16.gmra.mrb[0].mxu0 %v387
    %v554 = vpop.f32.mrb[0].mxu0
    %v555 = vadd.f32 0.0, %v554
    %v556 = vpop.f32.mrb[0].mxu0
    %v557 = vpop.f32.mrb[0].mxu0
    %v558 = vadd.f32 0.0, %v557
    %v559 = vpop.f32.mrb[0].mxu0
    %560 = vmatprep.mubr.bf16.mxu0 0
    %561 = vmatmul.mubr.bf16.gmra.mrb[0].mxu0 %v388
    %v562 = vpop.f32.mrb[0].mxu0
    %v563 = vadd.f32 0.0, %v562
    %v564 = vpop.f32.mrb[0].mxu0
    %v565 = vpop.f32.mrb[0].mxu0
    %v566 = vadd.f32 0.0, %v565
    %v567 = vpop.f32.mrb[0].mxu0
    %568 = vmatprep.mubr.bf16.mxu0 0
    %569 = vmatmul.mubr.bf16.gmra.mrb[0].mxu0 %v389
    %v570 = vpop.f32.mrb[0].mxu0
    %v571 = vadd.f32 0.0, %v570
    %v572 = vpop.f32.mrb[0].mxu0
    %v573 = vpop.f32.mrb[0].mxu0
    %v574 = vadd.f32 0.0, %v573
    %v575 = vpop.f32.mrb[0].mxu0
    %576 = vmatprep.mubr.bf16.mxu0 0
    %577 = vmatmul.mubr.bf16.gmra.mrb[0].mxu0 %v390
    %v578 = vpop.f32.mrb[0].mxu0
    %v579 = vadd.f32 0.0, %v578
    %v580 = vpop.f32.mrb[0].mxu0
    %v581 = vpop.f32.mrb[0].mxu0
    %v582 = vadd.f32 0.0, %v581
    %v583 = vpop.f32.mrb[0].mxu0
    %584 = vmatprep.mubr.bf16.mxu0 0
    %585 = vmatmul.mubr.bf16.gmra.mrb[0].mxu0 %v391
    %v586 = vpop.f32.mrb[0].mxu0
    %v587 = vadd.f32 0.0, %v586
    %v588 = vpop.f32.mrb[0].mxu0
    %v589 = vpop.f32.mrb[0].mxu0
    %v590 = vadd.f32 0.0, %v589
    %v591 = vpop.f32.mrb[0].mxu0
    %592 = vmatprep.mubr.bf16.mxu0 0
    %593 = vmatmul.mubr.bf16.gmra.mrb[0].mxu0 %v392
    %v594 = vpop.f32.mrb[0].mxu0
    %v595 = vadd.f32 0.0, %v594
    %v596 = vpop.f32.mrb[0].mxu0
    %v597 = vpop.f32.mrb[0].mxu0
    %v598 = vadd.f32 0.0, %v597
    %v599 = vpop.f32.mrb[0].mxu0
    %600 = vmatprep.mubr.bf16.mxu0 0
    %601 = vmatmul.mubr.bf16.gmra.mrb[0].mxu0 %v393
    %v602 = vpop.f32.mrb[0].mxu0
    %v603 = vadd.f32 0.0, %v602
    %v604 = vpop.f32.mrb[0].mxu0
    %v605 = vpop.f32.mrb[0].mxu0
    %v606 = vadd.f32 0.0, %v605
    %v607 = vpop.f32.mrb[0].mxu0
    %608 = vmatprep.mubr.bf16.mxu0 0
    %609 = vmatmul.mubr.bf16.gmra.mrb[0].mxu0 %v394
    %v610 = vpop.f32.mrb[0].mxu0
    %v611 = vadd.f32 0.0, %v610
    %v612 = vpop.f32.mrb[0].mxu0
    %v613 = vpop.f32.mrb[0].mxu0
    %v614 = vadd.f32 0.0, %v613
    %v615 = vpop.f32.mrb[0].mxu0
    %616 = vmatprep.mubr.bf16.mxu0 0
    %617 = vmatmul.mubr.bf16.gmra.mrb[0].mxu0 %v395
    %v618 = vpop.f32.mrb[0].mxu0
    %v619 = vadd.f32 0.0, %v618
    %v620 = vpop.f32.mrb[0].mxu0
    %v621 = vpop.f32.mrb[0].mxu0
    %v622 = vadd.f32 0.0, %v621
    %v623 = vpop.f32.mrb[0].mxu0
    %624 = vmatprep.mubr.bf16.mxu0 0
    %625 = vmatmul.mubr.bf16.gmra.mrb[0].mxu0 %v396
    %v626 = vpop.f32.mrb[0].mxu0
    %v627 = vadd.f32 0.0, %v626
    %v628 = vpop.f32.mrb[0].mxu0
    %v629 = vpop.f32.mrb[0].mxu0
    %v630 = vadd.f32 0.0, %v629
    %v631 = vpop.f32.mrb[0].mxu0
    %632 = vmatprep.mubr.bf16.mxu0 0
    %633 = vmatmul.mubr.bf16.gmra.mrb[0].mxu0 %v397
    %v634 = vpop.f32.mrb[0].mxu0
    %v635 = vadd.f32 0.0, %v634
    %v636 = vpop.f32.mrb[0].mxu0
    %v637 = vpop.f32.mrb[0].mxu0
    %v638 = vadd.f32 0.0, %v637
    %v639 = vpop.f32.mrb[0].mxu0
    %640 = vmatprep.mubr.bf16.mxu0 0
    %641 = vmatmul.mubr.bf16.gmra.mrb[0].mxu0 %v398
    %v642 = vpop.f32.mrb[0].mxu0
    %v643 = vadd.f32 0.0, %v642
    %v644 = vpop.f32.mrb[0].mxu0
    %v645 = vpop.f32.mrb[0].mxu0
    %v646 = vadd.f32 0.0, %v645
    %v647 = vpop.f32.mrb[0].mxu0
    %648 = vmatprep.mubr.bf16.mxu0 0
    %649 = vmatmul.mubr.bf16.gmra.mrb[0].mxu0 %v399
    %v650 = vpop.f32.mrb[0].mxu0
    %v651 = vadd.f32 0.0, %v650
    %v652 = vpop.f32.mrb[0].mxu0
    %v653 = vpop.f32.mrb[0].mxu0
    %v654 = vadd.f32 0.0, %v653
    %v655 = vpop.f32.mrb[0].mxu0
    %656 = vmatprep.mubr.bf16.mxu0 0
    %657 = vmatmul.mubr.bf16.gmra.mrb[0].mxu0 %v400
    %v658 = vpop.f32.mrb[0].mxu0
    %v659 = vadd.f32 0.0, %v658
    %v660 = vpop.f32.mrb[0].mxu0
    %v661 = vpop.f32.mrb[0].mxu0
    %v662 = vadd.f32 0.0, %v661
    %v663 = vpop.f32.mrb[0].mxu0
    %664 = vmatprep.mubr.bf16.mxu0 0
    %665 = vmatmul.mubr.bf16.gmra.mrb[0].mxu0 %v401
    %v666 = vpop.f32.mrb[0].mxu0
    %v667 = vadd.f32 0.0, %v666
    %v668 = vpop.f32.mrb[0].mxu0
    %v669 = vpop.f32.mrb[0].mxu0
    %v670 = vadd.f32 0.0, %v669
    %v671 = vpop.f32.mrb[0].mxu0
    %672 = vmatprep.mubr.bf16.mxu0 0
    %673 = vmatmul.mubr.bf16.gmra.mrb[0].mxu0 %v402
    %v674 = vpop.f32.mrb[0].mxu0
    %v675 = vadd.f32 0.0, %v674
    %v676 = vpop.f32.mrb[0].mxu0
    %v677 = vpop.f32.mrb[0].mxu0
    %v678 = vadd.f32 0.0, %v677
    %v679 = vpop.f32.mrb[0].mxu0
    %680 = vmatprep.mubr.bf16.mxu0 0
    %681 = vmatmul.mubr.bf16.gmra.mrb[0].mxu0 %v403
    %v682 = vpop.f32.mrb[0].mxu0
    %v683 = vadd.f32 0.0, %v682
    %v684 = vpop.f32.mrb[0].mxu0
    %v685 = vpop.f32.mrb[0].mxu0
    %v686 = vadd.f32 0.0, %v685
    %v687 = vpop.f32.mrb[0].mxu0
    %688 = vmatprep.mubr.bf16.mxu0 0
    %689 = vmatmul.mubr.bf16.gmra.mrb[0].mxu0 %v404
    %v690 = vpop.f32.mrb[0].mxu0
    %v691 = vadd.f32 0.0, %v690
    %v692 = vpop.f32.mrb[0].mxu0
    %v693 = vpop.f32.mrb[0].mxu0
    %v694 = vadd.f32 0.0, %v693
    %v695 = vpop.f32.mrb[0].mxu0
    %696 = vmatprep.mubr.bf16.mxu0 0
    %697 = vmatmul.mubr.bf16.gmra.mrb[0].mxu0 %v405
    %v698 = vpop.f32.mrb[0].mxu0
    %v699 = vadd.f32 0.0, %v698
    %v700 = vpop.f32.mrb[0].mxu0
    %v701 = vpop.f32.mrb[0].mxu0
    %v702 = vadd.f32 0.0, %v701
    %v703 = vpop.f32.mrb[0].mxu0
    %704 = vmatprep.mubr.bf16.mxu0 0
    %705 = vmatmul.mubr.bf16.gmra.mrb[0].mxu0 %v406
    %v706 = vpop.f32.mrb[0].mxu0
    %v707 = vadd.f32 0.0, %v706
    %v708 = vpop.f32.mrb[0].mxu0
    %v709 = vpop.f32.mrb[0].mxu0
    %v710 = vadd.f32 0.0, %v709
    %v711 = vpop.f32.mrb[0].mxu0
    %712 = vmatprep.mubr.bf16.mxu0 0
    %713 = vmatmul.mubr.bf16.gmra.mrb[0].mxu0 %v407
    %v714 = vpop.f32.mrb[0].mxu0
    %v715 = vadd.f32 0.0, %v714
    %v716 = vpop.f32.mrb[0].mxu0
    %v717 = vpop.f32.mrb[0].mxu0
    %v718 = vadd.f32 0.0, %v717
    %v719 = vpop.f32.mrb[0].mxu0
    %720 = vmatprep.mubr.bf16.mxu0 0
    %721 = vmatmul.mubr.bf16.gmra.mrb[0].mxu0 %v408
    %v722 = vpop.f32.mrb[0].mxu0
    %v723 = vadd.f32 0.0, %v722
    %v724 = vpop.f32.mrb[0].mxu0
    %v725 = vpop.f32.mrb[0].mxu0
    %v726 = vadd.f32 0.0, %v725
    %v727 = vpop.f32.mrb[0].mxu0
    %728 = vmatprep.mubr.bf16.mxu0 0
    %729 = vmatmul.mubr.bf16.gmra.mrb[0].mxu0 %v409
    %v730 = vpop.f32.mrb[0].mxu0
    %v731 = vadd.f32 0.0, %v730
    %v732 = vpop.f32.mrb[0].mxu0
    %v733 = vpop.f32.mrb[0].mxu0
    %v734 = vadd.f32 0.0, %v733
    %v735 = vpop.f32.mrb[0].mxu0
    %736 = vmatprep.mubr.bf16.mxu0 0
    %737 = vmatmul.mubr.bf16.gmra.mrb[0].mxu0 %v410
    %v738 = vpop.f32.mrb[0].mxu0
    %v739 = vadd.f32 0.0, %v738
    %v740 = vpop.f32.mrb[0].mxu0
    %v741 = vpop.f32.mrb[0].mxu0
    %v742 = vadd.f32 0.0, %v741
    %v743 = vpop.f32.mrb[0].mxu0
    %744 = vmatprep.mubr.bf16.mxu0 0
    %745 = vmatmul.mubr.bf16.gmra.mrb[0].mxu0 %v411
    %v746 = vpop.f32.mrb[0].mxu0
    %v747 = vadd.f32 0.0, %v746
    %v748 = vpop.f32.mrb[0].mxu0
    %v749 = vpop.f32.mrb[0].mxu0
    %v750 = vadd.f32 0.0, %v749
    %v751 = vpop.f32.mrb[0].mxu0
    %752 = vmatprep.mubr.bf16.mxu0 0
    %753 = vmatmul.mubr.bf16.gmra.mrb[0].mxu0 %v412
    %v754 = vpop.f32.mrb[0].mxu0
    %v755 = vadd.f32 0.0, %v754
    %v756 = vpop.f32.mrb[0].mxu0
    %v757 = vpop.f32.mrb[0].mxu0
    %v758 = vadd.f32 0.0, %v757
    %v759 = vpop.f32.mrb[0].mxu0
    %760 = vmatprep.mubr.bf16.mxu0 0
    %761 = vmatmul.mubr.bf16.gmra.mrb[0].mxu0 %v413
    %v762 = vpop.f32.mrb[0].mxu0
    %v763 = vadd.f32 0.0, %v762
    %v764 = vpop.f32.mrb[0].mxu0
    %v765 = vpop.f32.mrb[0].mxu0
    %v766 = vadd.f32 0.0, %v765
    %v767 = vpop.f32.mrb[0].mxu0
    %768 = vmatprep.mubr.bf16.mxu0 0
    %769 = vmatmul.mubr.bf16.gmra.mrb[0].mxu0 %v414
    %v770 = vpop.f32.mrb[0].mxu0
    %v771 = vadd.f32 0.0, %v770
    %v772 = vpop.f32.mrb[0].mxu0
    %v773 = vpop.f32.mrb[0].mxu0
    %v774 = vadd.f32 0.0, %v773
    %v775 = vpop.f32.mrb[0].mxu0
    %776 = vmatprep.mubr.bf16.mxu0 0
    %777 = vmatmul.mubr.bf16.gmra.mrb[0].mxu0 %v415
    %v778 = vpop.f32.mrb[0].mxu0
    %v779 = vadd.f32 0.0, %v778
    %v780 = vpop.f32.mrb[0].mxu0
    %v781 = vpop.f32.mrb[0].mxu0
    %v782 = vadd.f32 0.0, %v781
    %v783 = vpop.f32.mrb[0].mxu0
    %784 = vdwg.mxu0
    %v785 = vadd.f32 %v112, %v531
    %v786 = vadd.f32 %v113, %v534
    %v787 = vadd.f32 %v114, %v539
    %v788 = vadd.f32 %v115, %v542
    %v789 = vadd.f32 %v116, %v547
    %v790 = vadd.f32 %v117, %v550
    %v791 = vadd.f32 %v118, %v555
    %v792 = vadd.f32 %v119, %v558
    %v793 = vadd.f32 %v120, %v563
    %v794 = vadd.f32 %v121, %v566
    %v795 = vadd.f32 %v122, %v571
    %v796 = vadd.f32 %v123, %v574
    %v797 = vadd.f32 %v124, %v579
    %v798 = vadd.f32 %v125, %v582
    %v799 = vadd.f32 %v126, %v587
    %v800 = vadd.f32 %v127, %v590
    %v801 = vadd.f32 %v128, %v595
    %v802 = vadd.f32 %v129, %v598
    %v803 = vadd.f32 %v130, %v603
    %v804 = vadd.f32 %v131, %v606
    %v805 = vadd.f32 %v132, %v611
    %v806 = vadd.f32 %v133, %v614
    %v807 = vadd.f32 %v134, %v619
    %v808 = vadd.f32 %v135, %v622
    %v809 = vadd.f32 %v136, %v627
    %v810 = vadd.f32 %v137, %v630
    %v811 = vadd.f32 %v138, %v635
    %v812 = vadd.f32 %v139, %v638
    %v813 = vadd.f32 %v140, %v643
    %v814 = vadd.f32 %v141, %v646
    %v815 = vadd.f32 %v142, %v651
    %v816 = vadd.f32 %v143, %v654
    %v817 = vadd.f32 %v144, %v659
    %v818 = vadd.f32 %v145, %v662
    %v819 = vadd.f32 %v146, %v667
    %v820 = vadd.f32 %v147, %v670
    %v821 = vadd.f32 %v148, %v675
    %v822 = vadd.f32 %v149, %v678
    %v823 = vadd.f32 %v150, %v683
    %v824 = vadd.f32 %v151, %v686
    %v825 = vadd.f32 %v152, %v691
    %v826 = vadd.f32 %v153, %v694
    %v827 = vadd.f32 %v154, %v699
    %v828 = vadd.f32 %v155, %v702
    %v829 = vadd.f32 %v156, %v707
    %v830 = vadd.f32 %v157, %v710
    %v831 = vadd.f32 %v158, %v715
    %v832 = vadd.f32 %v159, %v718
    %v833 = vadd.f32 %v160, %v723
    %v834 = vadd.f32 %v161, %v726
    %v835 = vadd.f32 %v162, %v731
    %v836 = vadd.f32 %v163, %v734
    %v837 = vadd.f32 %v164, %v739
    %v838 = vadd.f32 %v165, %v742
    %v839 = vadd.f32 %v166, %v747
    %v840 = vadd.f32 %v167, %v750
    %v841 = vadd.f32 %v168, %v755
    %v842 = vadd.f32 %v169, %v758
    %v843 = vadd.f32 %v170, %v763
    %v844 = vadd.f32 %v171, %v766
    %v845 = vadd.f32 %v172, %v771
    %v846 = vadd.f32 %v173, %v774
    %v847 = vadd.f32 %v174, %v779
    %v848 = vadd.f32 %v175, %v782
    %849 = vst [vmem:[#allocation2] sm:$0xff] %v785
    %850 = vst [vmem:[#allocation2 + $0x8] sm:$0xff] %v786
    %851 = vst [vmem:[#allocation2 + $0x10] sm:$0xff] %v787
    %852 = vst [vmem:[#allocation2 + $0x18] sm:$0xff] %v788
    %853 = vst [vmem:[#allocation2 + $0x20] sm:$0xff] %v789
    %854 = vst [vmem:[#allocation2 + $0x28] sm:$0xff] %v790
    %855 = vst [vmem:[#allocation2 + $0x30] sm:$0xff] %v791
    %856 = vst [vmem:[#allocation2 + $0x38] sm:$0xff] %v792
    %857 = vst [vmem:[#allocation2 + $0x40] sm:$0xff] %v793
    %858 = vst [vmem:[#allocation2 + $0x48] sm:$0xff] %v794
    %859 = vst [vmem:[#allocation2 + $0x50] sm:$0xff] %v795
    %860 = vst [vmem:[#allocation2 + $0x58] sm:$0xff] %v796
    %861 = vst [vmem:[#allocation2 + $0x60] sm:$0xff] %v797
    %862 = vst [vmem:[#allocation2 + $0x68] sm:$0xff] %v798
    %863 = vst [vmem:[#allocation2 + $0x70] sm:$0xff] %v799
    %864 = vst [vmem:[#allocation2 + $0x78] sm:$0xff] %v800
    %865 = vst [vmem:[#allocation2 + $0x80] sm:$0xff] %v801
    %866 = vst [vmem:[#allocation2 + $0x88] sm:$0xff] %v802
    %867 = vst [vmem:[#allocation2 + $0x90] sm:$0xff] %v803
    %868 = vst [vmem:[#allocation2 + $0x98] sm:$0xff] %v804
    %869 = vst [vmem:[#allocation2 + $0xa0] sm:$0xff] %v805
    %870 = vst [vmem:[#allocation2 + $0xa8] sm:$0xff] %v806
    %871 = vst [vmem:[#allocation2 + $0xb0] sm:$0xff] %v807
    %872 = vst [vmem:[#allocation2 + $0xb8] sm:$0xff] %v808
    %873 = vst [vmem:[#allocation2 + $0xc0] sm:$0xff] %v809
    %874 = vst [vmem:[#allocation2 + $0xc8] sm:$0xff] %v810
    %875 = vst [vmem:[#allocation2 + $0xd0] sm:$0xff] %v811
    %876 = vst [vmem:[#allocation2 + $0xd8] sm:$0xff] %v812
    %877 = vst [vmem:[#allocation2 + $0xe0] sm:$0xff] %v813
    %878 = vst [vmem:[#allocation2 + $0xe8] sm:$0xff] %v814
    %879 = vst [vmem:[#allocation2 + $0xf0] sm:$0xff] %v815
    %880 = vst [vmem:[#allocation2 + $0xf8] sm:$0xff] %v816
    %881 = vst [vmem:[#allocation2 + $0x100] sm:$0xff] %v817
    %882 = vst [vmem:[#allocation2 + $0x108] sm:$0xff] %v818
    %883 = vst [vmem:[#allocation2 + $0x110] sm:$0xff] %v819
    %884 = vst [vmem:[#allocation2 + $0x118] sm:$0xff] %v820
    %885 = vst [vmem:[#allocation2 + $0x120] sm:$0xff] %v821
    %886 = vst [vmem:[#allocation2 + $0x128] sm:$0xff] %v822
    %887 = vst [vmem:[#allocation2 + $0x130] sm:$0xff] %v823
    %888 = vst [vmem:[#allocation2 + $0x138] sm:$0xff] %v824
    %889 = vst [vmem:[#allocation2 + $0x140] sm:$0xff] %v825
    %890 = vst [vmem:[#allocation2 + $0x148] sm:$0xff] %v826
    %891 = vst [vmem:[#allocation2 + $0x150] sm:$0xff] %v827
    %892 = vst [vmem:[#allocation2 + $0x158] sm:$0xff] %v828
    %893 = vst [vmem:[#allocation2 + $0x160] sm:$0xff] %v829
    %894 = vst [vmem:[#allocation2 + $0x168] sm:$0xff] %v830
    %895 = vst [vmem:[#allocation2 + $0x170] sm:$0xff] %v831
    %896 = vst [vmem:[#allocation2 + $0x178] sm:$0xff] %v832
    %897 = vst [vmem:[#allocation2 + $0x180] sm:$0xff] %v833
    %898 = vst [vmem:[#allocation2 + $0x188] sm:$0xff] %v834
    %899 = vst [vmem:[#allocation2 + $0x190] sm:$0xff] %v835
    %900 = vst [vmem:[#allocation2 + $0x198] sm:$0xff] %v836
    %901 = vst [vmem:[#allocation2 + $0x1a0] sm:$0xff] %v837
    %902 = vst [vmem:[#allocation2 + $0x1a8] sm:$0xff] %v838
    %903 = vst [vmem:[#allocation2 + $0x1b0] sm:$0xff] %v839
    %904 = vst [vmem:[#allocation2 + $0x1b8] sm:$0xff] %v840
    %905 = vst [vmem:[#allocation2 + $0x1c0] sm:$0xff] %v841
    %906 = vst [vmem:[#allocation2 + $0x1c8] sm:$0xff] %v842
    %907 = vst [vmem:[#allocation2 + $0x1d0] sm:$0xff] %v843
    %908 = vst [vmem:[#allocation2 + $0x1d8] sm:$0xff] %v844
    %909 = vst [vmem:[#allocation2 + $0x1e0] sm:$0xff] %v845
    %910 = vst [vmem:[#allocation2 + $0x1e8] sm:$0xff] %v846
    %911 = vst [vmem:[#allocation2 + $0x1f0] sm:$0xff] %v847
    %912 = vst [vmem:[#allocation2 + $0x1f8] sm:$0xff] %v848
    // Predicated region
    $region22: #{tpu_custom_call.1} parent=1 // pred_check
      %p913 = pneg %p44
    $region23: #{tpu_custom_call.1} parent=1 // pred_check_branch
      %915 = sbr.rel (%p913) target = $region25
    $region24: #{tpu_custom_call.1} parent=1 // pred_region
      %v916 = vld [vmem:[#allocation2] sm:$0xff]
      %v917 = vld [vmem:[#allocation2 + $0x8] sm:$0xff]
      %v918 = vld [vmem:[#allocation2 + $0x10] sm:$0xff]
      %v919 = vld [vmem:[#allocation2 + $0x18] sm:$0xff]
      %v920 = vld [vmem:[#allocation2 + $0x20] sm:$0xff]
      %v921 = vld [vmem:[#allocation2 + $0x28] sm:$0xff]
      %v922 = vld [vmem:[#allocation2 + $0x30] sm:$0xff]
      %v923 = vld [vmem:[#allocation2 + $0x38] sm:$0xff]
      %v924 = vld [vmem:[#allocation2 + $0x40] sm:$0xff]
      %v925 = vld [vmem:[#allocation2 + $0x48] sm:$0xff]
      %v926 = vld [vmem:[#allocation2 + $0x50] sm:$0xff]
      %v927 = vld [vmem:[#allocation2 + $0x58] sm:$0xff]
      %v928 = vld [vmem:[#allocation2 + $0x60] sm:$0xff]
      %v929 = vld [vmem:[#allocation2 + $0x68] sm:$0xff]
      %v930 = vld [vmem:[#allocation2 + $0x70] sm:$0xff]
      %v931 = vld [vmem:[#allocation2 + $0x78] sm:$0xff]
      %v932 = vld [vmem:[#allocation2 + $0x80] sm:$0xff]
      %v933 = vld [vmem:[#allocation2 + $0x88] sm:$0xff]
      %v934 = vld [vmem:[#allocation2 + $0x90] sm:$0xff]
      %v935 = vld [vmem:[#allocation2 + $0x98] sm:$0xff]
      %v936 = vld [vmem:[#allocation2 + $0xa0] sm:$0xff]
      %v937 = vld [vmem:[#allocation2 + $0xa8] sm:$0xff]
      %v938 = vld [vmem:[#allocation2 + $0xb0] sm:$0xff]
      %v939 = vld [vmem:[#allocation2 + $0xb8] sm:$0xff]
      %v940 = vld [vmem:[#allocation2 + $0xc0] sm:$0xff]
      %v941 = vld [vmem:[#allocation2 + $0xc8] sm:$0xff]
      %v942 = vld [vmem:[#allocation2 + $0xd0] sm:$0xff]
      %v943 = vld [vmem:[#allocation2 + $0xd8] sm:$0xff]
      %v944 = vld [vmem:[#allocation2 + $0xe0] sm:$0xff]
      %v945 = vld [vmem:[#allocation2 + $0xe8] sm:$0xff]
      %v946 = vld [vmem:[#allocation2 + $0xf0] sm:$0xff]
      %v947 = vld [vmem:[#allocation2 + $0xf8] sm:$0xff]
      %v948 = vld [vmem:[#allocation2 + $0x100] sm:$0xff]
      %v949 = vld [vmem:[#allocation2 + $0x108] sm:$0xff]
      %v950 = vld [vmem:[#allocation2 + $0x110] sm:$0xff]
      %v951 = vld [vmem:[#allocation2 + $0x118] sm:$0xff]
      %v952 = vld [vmem:[#allocation2 + $0x120] sm:$0xff]
      %v953 = vld [vmem:[#allocation2 + $0x128] sm:$0xff]
      %v954 = vld [vmem:[#allocation2 + $0x130] sm:$0xff]
      %v955 = vld [vmem:[#allocation2 + $0x138] sm:$0xff]
      %v956 = vld [vmem:[#allocation2 + $0x140] sm:$0xff]
      %v957 = vld [vmem:[#allocation2 + $0x148] sm:$0xff]
      %v958 = vld [vmem:[#allocation2 + $0x150] sm:$0xff]
      %v959 = vld [vmem:[#allocation2 + $0x158] sm:$0xff]
      %v960 = vld [vmem:[#allocation2 + $0x160] sm:$0xff]
      %v961 = vld [vmem:[#allocation2 + $0x168] sm:$0xff]
      %v962 = vld [vmem:[#allocation2 + $0x170] sm:$0xff]
      %v963 = vld [vmem:[#allocation2 + $0x178] sm:$0xff]
      %v964 = vld [vmem:[#allocation2 + $0x180] sm:$0xff]
      %v965 = vld [vmem:[#allocation2 + $0x188] sm:$0xff]
      %v966 = vld [vmem:[#allocation2 + $0x190] sm:$0xff]
      %v967 = vld [vmem:[#allocation2 + $0x198] sm:$0xff]
      %v968 = vld [vmem:[#allocation2 + $0x1a0] sm:$0xff]
      %v969 = vld [vmem:[#allocation2 + $0x1a8] sm:$0xff]
      %v970 = vld [vmem:[#allocation2 + $0x1b0] sm:$0xff]
      %v971 = vld [vmem:[#allocation2 + $0x1b8] sm:$0xff]
      %v972 = vld [vmem:[#allocation2 + $0x1c0] sm:$0xff]
      %v973 = vld [vmem:[#allocation2 + $0x1c8] sm:$0xff]
      %v974 = vld [vmem:[#allocation2 + $0x1d0] sm:$0xff]
      %v975 = vld [vmem:[#allocation2 + $0x1d8] sm:$0xff]
      %v976 = vld [vmem:[#allocation2 + $0x1e0] sm:$0xff]
      %v977 = vld [vmem:[#allocation2 + $0x1e8] sm:$0xff]
      %v978 = vld [vmem:[#allocation2 + $0x1f0] sm:$0xff]
      %v979 = vld [vmem:[#allocation2 + $0x1f8] sm:$0xff]
      %v980 = vpack.c.bf16 %v917, %v916
      %v981 = vpack.c.bf16 %v919, %v918
      %v982 = vpack.c.bf16 %v921, %v920
      %v983 = vpack.c.bf16 %v923, %v922
      %v984 = vpack.c.bf16 %v925, %v924
      %v985 = vpack.c.bf16 %v927, %v926
      %v986 = vpack.c.bf16 %v929, %v928
      %v987 = vpack.c.bf16 %v931, %v930
      %v988 = vpack.c.bf16 %v933, %v932
      %v989 = vpack.c.bf16 %v935, %v934
      %v990 = vpack.c.bf16 %v937, %v936
      %v991 = vpack.c.bf16 %v939, %v938
      %v992 = vpack.c.bf16 %v941, %v940
      %v993 = vpack.c.bf16 %v943, %v942
      %v994 = vpack.c.bf16 %v945, %v944
      %v995 = vpack.c.bf16 %v947, %v946
      %v996 = vpack.c.bf16 %v949, %v948
      %v997 = vpack.c.bf16 %v951, %v950
      %v998 = vpack.c.bf16 %v953, %v952
      %v999 = vpack.c.bf16 %v955, %v954
      %v1000 = vpack.c.bf16 %v957, %v956
      %v1001 = vpack.c.bf16 %v959, %v958
      %v1002 = vpack.c.bf16 %v961, %v960
      %v1003 = vpack.c.bf16 %v963, %v962
      %v1004 = vpack.c.bf16 %v965, %v964
      %v1005 = vpack.c.bf16 %v967, %v966
      %v1006 = vpack.c.bf16 %v969, %v968
      %v1007 = vpack.c.bf16 %v971, %v970
      %v1008 = vpack.c.bf16 %v973, %v972
      %v1009 = vpack.c.bf16 %v975, %v974
      %v1010 = vpack.c.bf16 %v977, %v976
      %v1011 = vpack.c.bf16 %v979, %v978
      %v1044 = vunpack.c.l.b16 %v980
      %v1045 = vunpack.c.h.b16 %v980
      %v1046 = vunpack.c.l.b16 %v981
      %v1047 = vunpack.c.h.b16 %v981
      %v1048 = vunpack.c.l.b16 %v982
      %v1049 = vunpack.c.h.b16 %v982
      %v1050 = vunpack.c.l.b16 %v983
      %v1051 = vunpack.c.h.b16 %v983
      %v1052 = vunpack.c.l.b16 %v984
      %v1053 = vunpack.c.h.b16 %v984
      %v1054 = vunpack.c.l.b16 %v985
      %v1055 = vunpack.c.h.b16 %v985
      %v1056 = vunpack.c.l.b16 %v986
      %v1057 = vunpack.c.h.b16 %v986
      %v1058 = vunpack.c.l.b16 %v987
      %v1059 = vunpack.c.h.b16 %v987
      %v1060 = vunpack.c.l.b16 %v988
      %v1061 = vunpack.c.h.b16 %v988
      %v1062 = vunpack.c.l.b16 %v989
      %v1063 = vunpack.c.h.b16 %v989
      %v1064 = vunpack.c.l.b16 %v990
      %v1065 = vunpack.c.h.b16 %v990
      %v1066 = vunpack.c.l.b16 %v991
      %v1067 = vunpack.c.h.b16 %v991
      %v1068 = vunpack.c.l.b16 %v992
      %v1069 = vunpack.c.h.b16 %v992
      %v1070 = vunpack.c.l.b16 %v993
      %v1071 = vunpack.c.h.b16 %v993
      %v1072 = vunpack.c.l.b16 %v994
      %v1073 = vunpack.c.h.b16 %v994
      %v1074 = vunpack.c.l.b16 %v995
      %v1075 = vunpack.c.h.b16 %v995
      %v1076 = vunpack.c.l.b16 %v996
      %v1077 = vunpack.c.h.b16 %v996
      %v1078 = vunpack.c.l.b16 %v997
      %v1079 = vunpack.c.h.b16 %v997
      %v1080 = vunpack.c.l.b16 %v998
      %v1081 = vunpack.c.h.b16 %v998
      %v1082 = vunpack.c.l.b16 %v999
      %v1083 = vunpack.c.h.b16 %v999
      %v1084 = vunpack.c.l.b16 %v1000
      %v1085 = vunpack.c.h.b16 %v1000
      %v1086 = vunpack.c.l.b16 %v1001
      %v1087 = vunpack.c.h.b16 %v1001
      %v1088 = vunpack.c.l.b16 %v1002
      %v1089 = vunpack.c.h.b16 %v1002
      %v1090 = vunpack.c.l.b16 %v1003
      %v1091 = vunpack.c.h.b16 %v1003
      %v1092 = vunpack.c.l.b16 %v1004
      %v1093 = vunpack.c.h.b16 %v1004
      %v1094 = vunpack.c.l.b16 %v1005
      %v1095 = vunpack.c.h.b16 %v1005
      %v1096 = vunpack.c.l.b16 %v1006
      %v1097 = vunpack.c.h.b16 %v1006
      %v1098 = vunpack.c.l.b16 %v1007
      %v1099 = vunpack.c.h.b16 %v1007
      %v1100 = vunpack.c.l.b16 %v1008
      %v1101 = vunpack.c.h.b16 %v1008
      %v1102 = vunpack.c.l.b16 %v1009
      %v1103 = vunpack.c.h.b16 %v1009
      %v1104 = vunpack.c.l.b16 %v1010
      %v1105 = vunpack.c.h.b16 %v1010
      %v1106 = vunpack.c.l.b16 %v1011
      %v1107 = vunpack.c.h.b16 %v1011
      %v1108 = vpack.c.b16 %v1044, %v1044
      %v1109 = vpack.c.b16 %v1045, %v1045
      %v1110 = vpack.c.b16 %v1046, %v1046
      %v1111 = vpack.c.b16 %v1047, %v1047
      %v1112 = vpack.c.b16 %v1048, %v1048
      %v1113 = vpack.c.b16 %v1049, %v1049
      %v1114 = vpack.c.b16 %v1050, %v1050
      %v1115 = vpack.c.b16 %v1051, %v1051
      %v1116 = vpack.c.b16 %v1052, %v1052
      %v1117 = vpack.c.b16 %v1053, %v1053
      %v1118 = vpack.c.b16 %v1054, %v1054
      %v1119 = vpack.c.b16 %v1055, %v1055
      %v1120 = vpack.c.b16 %v1056, %v1056
      %v1121 = vpack.c.b16 %v1057, %v1057
      %v1122 = vpack.c.b16 %v1058, %v1058
      %v1123 = vpack.c.b16 %v1059, %v1059
      %v1124 = vpack.c.b16 %v1060, %v1060
      %v1125 = vpack.c.b16 %v1061, %v1061
      %v1126 = vpack.c.b16 %v1062, %v1062
      %v1127 = vpack.c.b16 %v1063, %v1063
      %v1128 = vpack.c.b16 %v1064, %v1064
      %v1129 = vpack.c.b16 %v1065, %v1065
      %v1130 = vpack.c.b16 %v1066, %v1066
      %v1131 = vpack.c.b16 %v1067, %v1067
      %v1132 = vpack.c.b16 %v1068, %v1068
      %v1133 = vpack.c.b16 %v1069, %v1069
      %v1134 = vpack.c.b16 %v1070, %v1070
      %v1135 = vpack.c.b16 %v1071, %v1071
      %v1136 = vpack.c.b16 %v1072, %v1072
      %v1137 = vpack.c.b16 %v1073, %v1073
      %v1138 = vpack.c.b16 %v1074, %v1074
      %v1139 = vpack.c.b16 %v1075, %v1075
      %v1140 = vpack.c.b16 %v1076, %v1076
      %v1141 = vpack.c.b16 %v1077, %v1077
      %v1142 = vpack.c.b16 %v1078, %v1078
      %v1143 = vpack.c.b16 %v1079, %v1079
      %v1144 = vpack.c.b16 %v1080, %v1080
      %v1145 = vpack.c.b16 %v1081, %v1081
      %v1146 = vpack.c.b16 %v1082, %v1082
      %v1147 = vpack.c.b16 %v1083, %v1083
      %v1148 = vpack.c.b16 %v1084, %v1084
      %v1149 = vpack.c.b16 %v1085, %v1085
      %v1150 = vpack.c.b16 %v1086, %v1086
      %v1151 = vpack.c.b16 %v1087, %v1087
      %v1152 = vpack.c.b16 %v1088, %v1088
      %v1153 = vpack.c.b16 %v1089, %v1089
      %v1154 = vpack.c.b16 %v1090, %v1090
      %v1155 = vpack.c.b16 %v1091, %v1091
      %v1156 = vpack.c.b16 %v1092, %v1092
      %v1157 = vpack.c.b16 %v1093, %v1093
      %v1158 = vpack.c.b16 %v1094, %v1094
      %v1159 = vpack.c.b16 %v1095, %v1095
      %v1160 = vpack.c.b16 %v1096, %v1096
      %v1161 = vpack.c.b16 %v1097, %v1097
      %v1162 = vpack.c.b16 %v1098, %v1098
      %v1163 = vpack.c.b16 %v1099, %v1099
      %v1164 = vpack.c.b16 %v1100, %v1100
      %v1165 = vpack.c.b16 %v1101, %v1101
      %v1166 = vpack.c.b16 %v1102, %v1102
      %v1167 = vpack.c.b16 %v1103, %v1103
      %v1168 = vpack.c.b16 %v1104, %v1104
      %v1169 = vpack.c.b16 %v1105, %v1105
      %v1170 = vpack.c.b16 %v1106, %v1106
      %v1171 = vpack.c.b16 %v1107, %v1107
      %1236 = vst [vmem:[#allocation8] sm:$0xf] %v1108
      %1237 = vst [vmem:[#allocation8 + $0x4] sm:$0xf] %v1109
      %1238 = vst [vmem:[#allocation8 + $0x8] sm:$0xf] %v1110
      %1239 = vst [vmem:[#allocation8 + $0xc] sm:$0xf] %v1111
      %1240 = vst [vmem:[#allocation8 + $0x10] sm:$0xf] %v1112
      %1241 = vst [vmem:[#allocation8 + $0x14] sm:$0xf] %v1113
      %1242 = vst [vmem:[#allocation8 + $0x18] sm:$0xf] %v1114
      %1243 = vst [vmem:[#allocation8 + $0x1c] sm:$0xf] %v1115
      %1244 = vst [vmem:[#allocation8 + $0x20] sm:$0xf] %v1116
      %1245 = vst [vmem:[#allocation8 + $0x24] sm:$0xf] %v1117
      %1246 = vst [vmem:[#allocation8 + $0x28] sm:$0xf] %v1118
      %1247 = vst [vmem:[#allocation8 + $0x2c] sm:$0xf] %v1119
      %1248 = vst [vmem:[#allocation8 + $0x30] sm:$0xf] %v1120
      %1249 = vst [vmem:[#allocation8 + $0x34] sm:$0xf] %v1121
      %1250 = vst [vmem:[#allocation8 + $0x38] sm:$0xf] %v1122
      %1251 = vst [vmem:[#allocation8 + $0x3c] sm:$0xf] %v1123
      %1252 = vst [vmem:[#allocation8 + $0x40] sm:$0xf] %v1124
      %1253 = vst [vmem:[#allocation8 + $0x44] sm:$0xf] %v1125
      %1254 = vst [vmem:[#allocation8 + $0x48] sm:$0xf] %v1126
      %1255 = vst [vmem:[#allocation8 + $0x4c] sm:$0xf] %v1127
      %1256 = vst [vmem:[#allocation8 + $0x50] sm:$0xf] %v1128
      %1257 = vst [vmem:[#allocation8 + $0x54] sm:$0xf] %v1129
      %1258 = vst [vmem:[#allocation8 + $0x58] sm:$0xf] %v1130
      %1259 = vst [vmem:[#allocation8 + $0x5c] sm:$0xf] %v1131
      %1260 = vst [vmem:[#allocation8 + $0x60] sm:$0xf] %v1132
      %1261 = vst [vmem:[#allocation8 + $0x64] sm:$0xf] %v1133
      %1262 = vst [vmem:[#allocation8 + $0x68] sm:$0xf] %v1134
      %1263 = vst [vmem:[#allocation8 + $0x6c] sm:$0xf] %v1135
      %1264 = vst [vmem:[#allocation8 + $0x70] sm:$0xf] %v1136
      %1265 = vst [vmem:[#allocation8 + $0x74] sm:$0xf] %v1137
      %1266 = vst [vmem:[#allocation8 + $0x78] sm:$0xf] %v1138
      %1267 = vst [vmem:[#allocation8 + $0x7c] sm:$0xf] %v1139
      %1268 = vst [vmem:[#allocation8 + $0x80] sm:$0xf] %v1140
      %1269 = vst [vmem:[#allocation8 + $0x84] sm:$0xf] %v1141
      %1270 = vst [vmem:[#allocation8 + $0x88] sm:$0xf] %v1142
      %1271 = vst [vmem:[#allocation8 + $0x8c] sm:$0xf] %v1143
      %1272 = vst [vmem:[#allocation8 + $0x90] sm:$0xf] %v1144
      %1273 = vst [vmem:[#allocation8 + $0x94] sm:$0xf] %v1145
      %1274 = vst [vmem:[#allocation8 + $0x98] sm:$0xf] %v1146
      %1275 = vst [vmem:[#allocation8 + $0x9c] sm:$0xf] %v1147
      %1276 = vst [vmem:[#allocation8 + $0xa0] sm:$0xf] %v1148
      %1277 = vst [vmem:[#allocation8 + $0xa4] sm:$0xf] %v1149
      %1278 = vst [vmem:[#allocation8 + $0xa8] sm:$0xf] %v1150
      %1279 = vst [vmem:[#allocation8 + $0xac] sm:$0xf] %v1151
      %1280 = vst [vmem:[#allocation8 + $0xb0] sm:$0xf] %v1152
      %1281 = vst [vmem:[#allocation8 + $0xb4] sm:$0xf] %v1153
      %1282 = vst [vmem:[#allocation8 + $0xb8] sm:$0xf] %v1154
      %1283 = vst [vmem:[#allocation8 + $0xbc] sm:$0xf] %v1155
      %1284 = vst [vmem:[#allocation8 + $0xc0] sm:$0xf] %v1156
      %1285 = vst [vmem:[#allocation8 + $0xc4] sm:$0xf] %v1157
      %1286 = vst [vmem:[#allocation8 + $0xc8] sm:$0xf] %v1158
      %1287 = vst [vmem:[#allocation8 + $0xcc] sm:$0xf] %v1159
      %1288 = vst [vmem:[#allocation8 + $0xd0] sm:$0xf] %v1160
      %1289 = vst [vmem:[#allocation8 + $0xd4] sm:$0xf] %v1161
      %1290 = vst [vmem:[#allocation8 + $0xd8] sm:$0xf] %v1162
      %1291 = vst [vmem:[#allocation8 + $0xdc] sm:$0xf] %v1163
      %1292 = vst [vmem:[#allocation8 + $0xe0] sm:$0xf] %v1164
      %1293 = vst [vmem:[#allocation8 + $0xe4] sm:$0xf] %v1165
      %1294 = vst [vmem:[#allocation8 + $0xe8] sm:$0xf] %v1166
      %1295 = vst [vmem:[#allocation8 + $0xec] sm:$0xf] %v1167
      %1296 = vst [vmem:[#allocation8 + $0xf0] sm:$0xf] %v1168
      %1297 = vst [vmem:[#allocation8 + $0xf4] sm:$0xf] %v1169
      %1298 = vst [vmem:[#allocation8 + $0xf8] sm:$0xf] %v1170
      %1299 = vst [vmem:[#allocation8 + $0xfc] sm:$0xf] %v1171
      %v1300 = vadd.f32 %v916, %v917
      %v1301 = vadd.f32 %v1300, %v918
      %v1302 = vadd.f32 %v1301, %v919
      %v1303 = vadd.f32 %v1302, %v920
      %v1304 = vadd.f32 %v1303, %v921
      %v1305 = vadd.f32 %v1304, %v922
      %v1306 = vadd.f32 %v1305, %v923
      %v1307 = vadd.f32 %v1306, %v924
      %v1308 = vadd.f32 %v1307, %v925
      %v1309 = vadd.f32 %v1308, %v926
      %v1310 = vadd.f32 %v1309, %v927
      %v1311 = vadd.f32 %v1310, %v928
      %v1312 = vadd.f32 %v1311, %v929
      %v1313 = vadd.f32 %v1312, %v930
      %v1314 = vadd.f32 %v1313, %v931
      %v1315 = vadd.f32 %v1314, %v932
      %v1316 = vadd.f32 %v1315, %v933
      %v1317 = vadd.f32 %v1316, %v934
      %v1318 = vadd.f32 %v1317, %v935
      %v1319 = vadd.f32 %v1318, %v936
      %v1320 = vadd.f32 %v1319, %v937
      %v1321 = vadd.f32 %v1320, %v938
      %v1322 = vadd.f32 %v1321, %v939
      %v1323 = vadd.f32 %v1322, %v940
      %v1324 = vadd.f32 %v1323, %v941
      %v1325 = vadd.f32 %v1324, %v942
      %v1326 = vadd.f32 %v1325, %v943
      %v1327 = vadd.f32 %v1326, %v944
      %v1328 = vadd.f32 %v1327, %v945
      %v1329 = vadd.f32 %v1328, %v946
      %v1330 = vadd.f32 %v1329, %v947
      %v1331 = vadd.f32 %v1330, %v948
      %v1332 = vadd.f32 %v1331, %v949
      %v1333 = vadd.f32 %v1332, %v950
      %v1334 = vadd.f32 %v1333, %v951
      %v1335 = vadd.f32 %v1334, %v952
      %v1336 = vadd.f32 %v1335, %v953
      %v1337 = vadd.f32 %v1336, %v954
      %v1338 = vadd.f32 %v1337, %v955
      %v1339 = vadd.f32 %v1338, %v956
      %v1340 = vadd.f32 %v1339, %v957
      %v1341 = vadd.f32 %v1340, %v958
      %v1342 = vadd.f32 %v1341, %v959
      %v1343 = vadd.f32 %v1342, %v960
      %v1344 = vadd.f32 %v1343, %v961
      %v1345 = vadd.f32 %v1344, %v962
      %v1346 = vadd.f32 %v1345, %v963
      %v1347 = vadd.f32 %v1346, %v964
      %v1348 = vadd.f32 %v1347, %v965
      %v1349 = vadd.f32 %v1348, %v966
      %v1350 = vadd.f32 %v1349, %v967
      %v1351 = vadd.f32 %v1350, %v968
      %v1352 = vadd.f32 %v1351, %v969
      %v1353 = vadd.f32 %v1352, %v970
      %v1354 = vadd.f32 %v1353, %v971
      %v1355 = vadd.f32 %v1354, %v972
      %v1356 = vadd.f32 %v1355, %v973
      %v1357 = vadd.f32 %v1356, %v974
      %v1358 = vadd.f32 %v1357, %v975
      %v1359 = vadd.f32 %v1358, %v976
      %v1360 = vadd.f32 %v1359, %v977
      %v1361 = vadd.f32 %v1360, %v978
      %v1362 = vadd.f32 %v1361, %v979
      %v1363 = vrot.slane %v1362, 4
      %v1364 = vadd.f32 %v1362, %v1363
      %v1365 = vrot.slane %v1364, 2
      %v1366 = vadd.f32 %v1364, %v1365
      %v1367 = vrot.slane %v1366, 1
      %v1368 = vadd.f32 %v1366, %v1367
      %v1369 = vmul.f32 %v916, %v916
      %v1370 = vmul.f32 %v917, %v917
      %v1371 = vmul.f32 %v918, %v918
      %v1372 = vmul.f32 %v919, %v919
      %v1373 = vmul.f32 %v920, %v920
      %v1374 = vmul.f32 %v921, %v921
      %v1375 = vmul.f32 %v922, %v922
      %v1376 = vmul.f32 %v923, %v923
      %v1377 = vmul.f32 %v924, %v924
      %v1378 = vmul.f32 %v925, %v925
      %v1379 = vmul.f32 %v926, %v926
      %v1380 = vmul.f32 %v927, %v927
      %v1381 = vmul.f32 %v928, %v928
      %v1382 = vmul.f32 %v929, %v929
      %v1383 = vmul.f32 %v930, %v930
      %v1384 = vmul.f32 %v931, %v931
      %v1385 = vmul.f32 %v932, %v932
      %v1386 = vmul.f32 %v933, %v933
      %v1387 = vmul.f32 %v934, %v934
      %v1388 = vmul.f32 %v935, %v935
      %v1389 = vmul.f32 %v936, %v936
      %v1390 = vmul.f32 %v937, %v937
      %v1391 = vmul.f32 %v938, %v938
      %v1392 = vmul.f32 %v939, %v939
      %v1393 = vmul.f32 %v940, %v940
      %v1394 = vmul.f32 %v941, %v941
      %v1395 = vmul.f32 %v942, %v942
      %v1396 = vmul.f32 %v943, %v943
      %v1397 = vmul.f32 %v944, %v944
      %v1398 = vmul.f32 %v945, %v945
      %v1399 = vmul.f32 %v946, %v946
      %v1400 = vmul.f32 %v947, %v947
      %v1401 = vmul.f32 %v948, %v948
      %v1402 = vmul.f32 %v949, %v949
      %v1403 = vmul.f32 %v950, %v950
      %v1404 = vmul.f32 %v951, %v951
      %v1405 = vmul.f32 %v952, %v952
      %v1406 = vmul.f32 %v953, %v953
      %v1407 = vmul.f32 %v954, %v954
      %v1408 = vmul.f32 %v955, %v955
      %v1409 = vmul.f32 %v956, %v956
      %v1410 = vmul.f32 %v957, %v957
      %v1411 = vmul.f32 %v958, %v958
      %v1412 = vmul.f32 %v959, %v959
      %v1413 = vmul.f32 %v960, %v960
      %v1414 = vmul.f32 %v961, %v961
      %v1415 = vmul.f32 %v962, %v962
      %v1416 = vmul.f32 %v963, %v963
      %v1417 = vmul.f32 %v964, %v964
      %v1418 = vmul.f32 %v965, %v965
      %v1419 = vmul.f32 %v966, %v966
      %v1420 = vmul.f32 %v967, %v967
      %v1421 = vmul.f32 %v968, %v968
      %v1422 = vmul.f32 %v969, %v969
      %v1423 = vmul.f32 %v970, %v970
      %v1424 = vmul.f32 %v971, %v971
      %v1425 = vmul.f32 %v972, %v972
      %v1426 = vmul.f32 %v973, %v973
      %v1427 = vmul.f32 %v974, %v974
      %v1428 = vmul.f32 %v975, %v975
      %v1429 = vmul.f32 %v976, %v976
      %v1430 = vmul.f32 %v977, %v977
      %v1431 = vmul.f32 %v978, %v978
      %v1432 = vmul.f32 %v979, %v979
      %v1433 = vadd.f32 %v1369, %v1370
      %v1434 = vadd.f32 %v1433, %v1371
      %v1435 = vadd.f32 %v1434, %v1372
      %v1436 = vadd.f32 %v1435, %v1373
      %v1437 = vadd.f32 %v1436, %v1374
      %v1438 = vadd.f32 %v1437, %v1375
      %v1439 = vadd.f32 %v1438, %v1376
      %v1440 = vadd.f32 %v1439, %v1377
      %v1441 = vadd.f32 %v1440, %v1378
      %v1442 = vadd.f32 %v1441, %v1379
      %v1443 = vadd.f32 %v1442, %v1380
      %v1444 = vadd.f32 %v1443, %v1381
      %v1445 = vadd.f32 %v1444, %v1382
      %v1446 = vadd.f32 %v1445, %v1383
      %v1447 = vadd.f32 %v1446, %v1384
      %v1448 = vadd.f32 %v1447, %v1385
      %v1449 = vadd.f32 %v1448, %v1386
      %v1450 = vadd.f32 %v1449, %v1387
      %v1451 = vadd.f32 %v1450, %v1388
      %v1452 = vadd.f32 %v1451, %v1389
      %v1453 = vadd.f32 %v1452, %v1390
      %v1454 = vadd.f32 %v1453, %v1391
      %v1455 = vadd.f32 %v1454, %v1392
      %v1456 = vadd.f32 %v1455, %v1393
      %v1457 = vadd.f32 %v1456, %v1394
      %v1458 = vadd.f32 %v1457, %v1395
      %v1459 = vadd.f32 %v1458, %v1396
      %v1460 = vadd.f32 %v1459, %v1397
      %v1461 = vadd.f32 %v1460, %v1398
      %v1462 = vadd.f32 %v1461, %v1399
      %v1463 = vadd.f32 %v1462, %v1400
      %v1464 = vadd.f32 %v1463, %v1401
      %v1465 = vadd.f32 %v1464, %v1402
      %v1466 = vadd.f32 %v1465, %v1403
      %v1467 = vadd.f32 %v1466, %v1404
      %v1468 = vadd.f32 %v1467, %v1405
      %v1469 = vadd.f32 %v1468, %v1406
      %v1470 = vadd.f32 %v1469, %v1407
      %v1471 = vadd.f32 %v1470, %v1408
      %v1472 = vadd.f32 %v1471, %v1409
      %v1473 = vadd.f32 %v1472, %v1410
      %v1474 = vadd.f32 %v1473, %v1411
      %v1475 = vadd.f32 %v1474, %v1412
      %v1476 = vadd.f32 %v1475, %v1413
      %v1477 = vadd.f32 %v1476, %v1414
      %v1478 = vadd.f32 %v1477, %v1415
      %v1479 = vadd.f32 %v1478, %v1416
      %v1480 = vadd.f32 %v1479, %v1417
      %v1481 = vadd.f32 %v1480, %v1418
      %v1482 = vadd.f32 %v1481, %v1419
      %v1483 = vadd.f32 %v1482, %v1420
      %v1484 = vadd.f32 %v1483, %v1421
      %v1485 = vadd.f32 %v1484, %v1422
      %v1486 = vadd.f32 %v1485, %v1423
      %v1487 = vadd.f32 %v1486, %v1424
      %v1488 = vadd.f32 %v1487, %v1425
      %v1489 = vadd.f32 %v1488, %v1426
      %v1490 = vadd.f32 %v1489, %v1427
      %v1491 = vadd.f32 %v1490, %v1428
      %v1492 = vadd.f32 %v1491, %v1429
      %v1493 = vadd.f32 %v1492, %v1430
      %v1494 = vadd.f32 %v1493, %v1431
      %v1495 = vadd.f32 %v1494, %v1432
      %v1496 = vrot.slane %v1495, 4
      %v1497 = vadd.f32 %v1495, %v1496
      %v1498 = vrot.slane %v1497, 2
      %v1499 = vadd.f32 %v1497, %v1498
      %v1500 = vrot.slane %v1499, 1
      %v1501 = vadd.f32 %v1499, %v1500
      %vm1502 = vcmask 1040384
      %v1503 = vsel %vm1502, %v1368, %v1501
      %1504 = vst [vmem:[#allocation9] sm:$0x3] %v1503
    $region25: #{tpu_custom_call.1} parent=1 // pred_fallthru
      _
    // Predicated region
    $region26: #{tpu_custom_call.1} parent=1 // pred_check
      _
    $region27: #{tpu_custom_call.1} parent=1 // pred_check_branch
      %1506 = sbr.rel (0) target = $region29
    $region28: #{tpu_custom_call.1} parent=1 // pred_region
      %s1508 = ssub.s32 4096, 4096
      %1509 = vsyncadd [#allocation5], %s1508
      %s1510 = sshll.u32 [#allocation8], 4
      %s1511 = int_to_ptr.vmem [resolvable:$true] %s1510
      %1516 = dma.vmem_to_hbm [thread:$0]  %s1511, 4096, %s2, [#allocation5], 64, 64, 4
    $region29: #{tpu_custom_call.1} parent=1 // pred_fallthru
      _
    // Predicated region
    $region30: #{tpu_custom_call.1} parent=1 // pred_check
      _
    $region31: #{tpu_custom_call.1} parent=1 // pred_check_branch
      %1518 = sbr.rel (0) target = $region33
    $region32: #{tpu_custom_call.1} parent=1 // pred_region
      %s1520 = ssub.s32 32, 32
      %1521 = vsyncadd [#allocation10], %s1520
      %s1523 = sshll.u32 [#allocation9], 4
      %s1524 = int_to_ptr.vmem [resolvable:$true] %s1523
      %1526 = dma.vmem_to_hbm [thread:$0]  %s1524, 32, %s3, [#allocation10]
    $region33: #{tpu_custom_call.1} parent=1 // pred_fallthru
      _
    // Predicated region
    $region34: #{tpu_custom_call.1} parent=1 // pred_check
      _
    $region35: #{tpu_custom_call.1} parent=1 // pred_check_branch
      %1528 = sbr.rel (0) target = $region37
    $region36: #{tpu_custom_call.1} parent=1 // pred_region
      %1529 = dma.done [#allocation5], 4096
    $region37: #{tpu_custom_call.1} parent=1 // pred_fallthru
      _
    // Predicated region
    $region38: #{tpu_custom_call.1} parent=1 // pred_check
      _
    $region39: #{tpu_custom_call.1} parent=1 // pred_check_branch
      %1531 = sbr.rel (0) target = $region41
    $region40: #{tpu_custom_call.1} parent=1 // pred_region
      %1532 = dma.done [#allocation10], 32
    $region41: #{tpu_custom_call.1} parent=1 // pred_fallthru
      _
    %1533 = vsyncpa [#allocation4], 1
    %1534 = vsyncpa [#allocation7], 1
    %1535 = vsyncpa [#allocation5], 1
    %1536 = vsyncpa [#allocation10], 1

</llo_original>
